<compile_context>
chip_gen: v6e
topology: v6e:2x2x1
jax: 0.10.0
libtpu: 0.0.40
codegen_flags: <defaults>
</compile_context>

<pallas_src>
import functools

import jax
import jax.numpy as jnp
from jax.experimental import pallas as pl
from jax.experimental.pallas import tpu as pltpu


_VMEM = pl.BlockSpec(memory_space=pltpu.MemorySpace.VMEM)


def _leaky(z):
    return jnp.maximum(z, 0.2 * z)


def _tap_accumulate(p, cout, l_out, ow):
    """Sum the 4 statically-shifted (cout, l_out) tap blocks of p (4*cout, L)."""
    offs = (0, 1, ow + 1, ow + 2)        # tap order (di, dj) = 00, 01, 10, 11
    acc = p[0:cout, 0:l_out]
    for t in range(1, 4):
        off = offs[t]
        acc = acc + p[t * cout:(t + 1) * cout, off:off + l_out]
    return acc


def _conv_bias_act_kernel(s_ref, w_ref, b_ref, o_ref, *, cout, l_out, ow):
    """Fused conv1_1 ++ conv1_2 ++ concat (s2d matmul) + bias + LeakyReLU."""
    p = jnp.dot(w_ref[...], s_ref[...], preferred_element_type=jnp.float32)
    z = _tap_accumulate(p, cout, l_out, ow) + b_ref[...]
    o_ref[...] = _leaky(z)


def _conv_bn_act_kernel(s_ref, w_ref, g_ref, bt_ref, m_ref, o_ref, *,
                        cout, l_out, ow, count):
    """conv (s2d matmul) + training-mode BatchNorm + LeakyReLU.

    The conv bias is omitted: it is cancelled exactly by the BN mean
    subtraction (bit-identical result).
    """
    p = jnp.dot(w_ref[...], s_ref[...], preferred_element_type=jnp.float32)
    z = _tap_accumulate(p, cout, l_out, ow)
    mask = m_ref[...]                                   # (1, l_out) valid cols
    inv_n = 1.0 / float(count)
    mean = jnp.sum(z * mask, axis=1, keepdims=True) * inv_n
    cen = z - mean
    var = jnp.sum(cen * cen * mask, axis=1, keepdims=True) * inv_n
    y = cen * (g_ref[...] * jax.lax.rsqrt(var + 1e-5)) + bt_ref[...]
    o_ref[...] = _leaky(y)


def _conv_bn_act_head_kernel(s_ref, w_ref, g_ref, bt_ref, m_ref, w4_ref,
                             b4_ref, o_ref, *, cout, l_out, ow, count,
                             n_batch):
    """conv3 + BN + leaky, then conv4 (full 4x4x4d contraction -> 1x1) as a
    multiply+reduce epilogue, then sigmoid.  conv3 output never leaves VMEM."""
    p = jnp.dot(w_ref[...], s_ref[...], preferred_element_type=jnp.float32)
    z = _tap_accumulate(p, cout, l_out, ow)
    mask = m_ref[...]
    inv_n = 1.0 / float(count)
    mean = jnp.sum(z * mask, axis=1, keepdims=True) * inv_n
    cen = z - mean
    var = jnp.sum(cen * cen * mask, axis=1, keepdims=True) * inv_n
    y = _leaky(cen * (g_ref[...] * jax.lax.rsqrt(var + 1e-5)) + bt_ref[...])
    outs = []
    for n in range(n_batch):
        prod = y * w4_ref[n]                         # (cout, l_out)
        s = jnp.sum(prod, axis=1, keepdims=True)     # lane (XLU) reduce
        s = jnp.sum(s, axis=0, keepdims=True)        # sublane reduce -> (1, 1)
        outs.append(s)
    logits = jnp.concatenate(outs, axis=1) + b4_ref[...]     # (1, n_batch)
    o_ref[...] = 1.0 / (1.0 + jnp.exp(-logits))


def _call(kernel, out_shape, *inputs):
    return pl.pallas_call(
        kernel,
        out_shape=out_shape,
        in_specs=[_VMEM] * len(inputs),
        out_specs=_VMEM,
    )(*inputs)


# ----------------------------------------------------------------------------
# Host-side (jit-fused) layout glue: all of these are activation-sized shape
# plumbing, no 16x im2col materialization.
# ----------------------------------------------------------------------------
def _s2d_flatten_T(x_nhwc):
    """Pad by 1, space-to-depth by 2, flatten -> (4C, N*(H/2+1)*(W/2+1)) bf16."""
    n, h, w, c = x_nhwc.shape
    rp, cp = h // 2 + 1, w // 2 + 1
    xp = jnp.pad(x_nhwc, ((0, 0), (1, 1), (1, 1), (0, 0)))
    s = xp.reshape(n, rp, 2, cp, 2, c).transpose(0, 1, 3, 2, 4, 5)
    s = s.reshape(n * rp * cp, 4 * c)
    return s.T.astype(jnp.bfloat16)


def _unflatten_T(y_t, n, oh, ow, cout):
    """(cout, L') kernel output -> (N, OH, OW, Cout) NHWC activation."""
    l_full = n * (oh + 1) * (ow + 1)
    y = jnp.pad(y_t, ((0, 0), (0, l_full - y_t.shape[1])))
    y = y.reshape(cout, n, oh + 1, ow + 1)[:, :, :oh, :ow]
    return jnp.transpose(y, (1, 2, 3, 0))


def _valid_mask(n, oh, ow, l_out):
    m = jnp.zeros((n, oh + 1, ow + 1), jnp.float32)
    m = m.at[:, :oh, :ow].set(1.0)
    return m.reshape(1, n * (oh + 1) * (ow + 1))[:, :l_out]


def _conv_weight_cat_T(w_oihw):
    """(Cout, Cin, 4, 4) torch conv weight -> (4*Cout, 4*Cin) s2d-matmul weight."""
    cout, cin = w_oihw.shape[0], w_oihw.shape[1]
    w6 = w_oihw.reshape(cout, cin, 2, 2, 2, 2)        # (o, ch, di, a, dj, b)
    wb = jnp.transpose(w6, (2, 4, 0, 3, 5, 1))         # (di, dj, o, a, b, ch)
    return wb.reshape(4 * cout, 4 * cin).astype(jnp.bfloat16)


def _conv4_head_weight(w4, n, oh, ow, l_out):
    """(1, C, 4, 4) conv4 weight -> per-sample (N, C, L') multiply+reduce weight
    (zeros on padded/garbage columns and on other samples' columns)."""
    c = w4.shape[1]
    base = jnp.zeros((c, oh + 1, ow + 1), jnp.float32)
    base = base.at[:, :oh, :ow].set(w4[0].astype(jnp.float32))
    base = base.reshape(c, (oh + 1) * (ow + 1))
    blk = (oh + 1) * (ow + 1)
    out = jnp.zeros((n, c, l_out), jnp.float32)
    for i in range(n):
        width = min(blk, l_out - i * blk)
        out = out.at[i, :, i * blk:i * blk + width].set(base[:, :width])
    return out


class DiscriminatorPallas:
    """cDCGAN Discriminator forward; d shrunk for a small self-contained test."""

    def __init__(self, d=16, key=jax.random.PRNGKey(42), std=0.02):
        ks = jax.random.split(key, 5)

        def w(k, cout, cin):
            return std * jax.random.normal(k, (cout, cin, 4, 4), jnp.float32)

        self.d = d
        w1_1 = w(ks[0], d // 2, 1)
        w1_2 = w(ks[1], d // 2, 10)
        self.b1 = jnp.zeros((d,), jnp.float32)          # concat(b1_1, b1_2)
        w2 = w(ks[2], 2 * d, d)
        self.g2 = jnp.ones((2 * d,), jnp.float32)
        self.be2 = jnp.zeros((2 * d,), jnp.float32)
        w3 = w(ks[3], 4 * d, 2 * d)
        self.g3 = jnp.ones((4 * d,), jnp.float32)
        self.be3 = jnp.zeros((4 * d,), jnp.float32)
        self.w4 = w(ks[4], 1, 4 * d)
        self.b4 = jnp.zeros((1,), jnp.float32)

        # conv1_1 / conv1_2 / channel-concat fused via a block-diagonal weight
        # acting on the 11-channel (image ++ label) input.
        w1 = jnp.zeros((d, 11, 4, 4), jnp.float32)
        w1 = w1.at[: d // 2, 0:1].set(w1_1).at[d // 2:, 1:11].set(w1_2)

        # Matmul-ready s2d weights, built once (bf16 for the MXU).
        self.w1_cat = _conv_weight_cat_T(w1)            # (4d,  44)
        self.w2_cat = _conv_weight_cat_T(w2)            # (8d,  4d)
        self.w3_cat = _conv_weight_cat_T(w3)            # (16d, 8d)

        self._fwd = jax.jit(self._forward)

    def _forward(self, inp_nchw, lbl_nchw):
        d = self.d
        n = inp_nchw.shape[0]
        h = inp_nchw.shape[2]

        # NCHW -> NHWC, fuse the two input branches on the channel axis.
        x = jnp.concatenate([inp_nchw, lbl_nchw], axis=1)
        x = jnp.transpose(x, (0, 2, 3, 1)).astype(jnp.float32)   # (N,32,32,11)

        # ---- layer 1: conv1_1 ++ conv1_2 (block-diag) + bias + leaky ----
        oh1 = h // 2
        l1p = n * (oh1 + 1) * (oh1 + 1) - oh1 - 2
        y1 = _call(
            functools.partial(_conv_bias_act_kernel, cout=d, l_out=l1p, ow=oh1),
            jax.ShapeDtypeStruct((d, l1p), jnp.float32),
            _s2d_flatten_T(x), self.w1_cat, self.b1.reshape(d, 1),
        )
        x1 = _unflatten_T(y1, n, oh1, oh1, d)                    # (N,16,16,d)

        # ---- layer 2: conv2 + BatchNorm(train) + leaky ----
        oh2 = oh1 // 2
        l2p = n * (oh2 + 1) * (oh2 + 1) - oh2 - 2
        y2 = _call(
            functools.partial(_conv_bn_act_kernel, cout=2 * d, l_out=l2p,
                              ow=oh2, count=n * oh2 * oh2),
            jax.ShapeDtypeStruct((2 * d, l2p), jnp.float32),
            _s2d_flatten_T(x1), self.w2_cat,
            self.g2.reshape(2 * d, 1), self.be2.reshape(2 * d, 1),
            _valid_mask(n, oh2, oh2, l2p),
        )
        x2 = _unflatten_T(y2, n, oh2, oh2, 2 * d)                # (N,8,8,2d)

        # ---- layers 3+4: conv3 + BN + leaky, conv4 reduce + sigmoid ----
        oh3 = oh2 // 2
        l3p = n * (oh3 + 1) * (oh3 + 1) - oh3 - 2
        out = _call(
            functools.partial(_conv_bn_act_head_kernel, cout=4 * d, l_out=l3p,
                              ow=oh3, count=n * oh3 * oh3, n_batch=n),
            jax.ShapeDtypeStruct((1, n), jnp.float32),
            _s2d_flatten_T(x2), self.w3_cat,
            self.g3.reshape(4 * d, 1), self.be3.reshape(4 * d, 1),
            _valid_mask(n, oh3, oh3, l3p),
            _conv4_head_weight(self.w4, n, oh3, oh3, l3p),
            self.b4.reshape(1, 1),
        )
        # (1, N) -> (N, 1, 1, 1), matching PyTorch's conv4 output layout.
        return jnp.transpose(out, (1, 0)).reshape(n, 1, 1, 1)

    def __call__(self, inp_nchw, lbl_nchw):
        return self._fwd(inp_nchw, lbl_nchw)


if __name__ == "__main__":
    key = jax.random.PRNGKey(0)
    k_img, k_lab = jax.random.split(key)

    N, d = 2, 16
    # cDCGAN discriminator expects 32x32 images and a 10-channel one-hot label map
    img = jax.random.normal(k_img, (N, 1, 32, 32), jnp.float32)
    lbl_idx = jax.random.randint(k_lab, (N,), 0, 10)
    lbl = jax.nn.one_hot(lbl_idx, 10, dtype=jnp.float32)[:, :, None, None]
    lbl = jnp.broadcast_to(lbl, (N, 10, 32, 32))

    model = DiscriminatorPallas(d=d)
    out = model(img, lbl)
    out = jax.block_until_ready(out)

    assert out.shape == (N, 1, 1, 1), out.shape
    assert bool(jnp.all((out >= 0.0) & (out <= 1.0)))
    print("KERNEL_OK")
</pallas_src>

<mosaic_0001>
module attributes {stable_mosaic.version = 11 : i64} {
  func.func @_conv_bias_act_kernel(%arg0: memref<44x578xbf16, #tpu.memory_space<vmem>>, %arg1: memref<64x44xbf16, #tpu.memory_space<vmem>>, %arg2: memref<16x1xf32, #tpu.memory_space<vmem>>, %arg3: memref<16x560xf32, #tpu.memory_space<vmem>>) attributes {dimension_semantics = [], scalar_prefetch = 0 : i64, scratch_operands = 0 : i64, tpu.core_type = #tpu.core_type<tc>} {
    %c0 = arith.constant 0 : index
    %c0_0 = arith.constant 0 : index
    %0 = vector.load %arg1[%c0, %c0_0] : memref<64x44xbf16, #tpu.memory_space<vmem>>, vector<64x44xbf16>
    %c0_1 = arith.constant 0 : index
    %c0_2 = arith.constant 0 : index
    %1 = vector.load %arg0[%c0_1, %c0_2] : memref<44x578xbf16, #tpu.memory_space<vmem>>, vector<44x578xbf16>
    %cst = arith.constant dense<0.000000e+00> : vector<64x578xf32>
    %2 = tpu.matmul %0, %1, %cst {dimension_numbers = #tpu.dot_dimension_numbers<[1], [0], [0], [1], [0, 0, 1, 1], [], []>} : vector<64x44xbf16>, vector<44x578xbf16>, vector<64x578xf32> -> vector<64x578xf32>
    %3 = vector.extract_strided_slice %2 {offsets = [0, 0], sizes = [16, 560], strides = [1, 1]} : vector<64x578xf32> to vector<16x560xf32>
    %4 = vector.extract_strided_slice %2 {offsets = [16, 1], sizes = [16, 560], strides = [1, 1]} : vector<64x578xf32> to vector<16x560xf32>
    %5 = arith.addf %3, %4 : vector<16x560xf32>
    %6 = vector.extract_strided_slice %2 {offsets = [32, 17], sizes = [16, 560], strides = [1, 1]} : vector<64x578xf32> to vector<16x560xf32>
    %7 = arith.addf %5, %6 : vector<16x560xf32>
    %8 = vector.extract_strided_slice %2 {offsets = [48, 18], sizes = [16, 560], strides = [1, 1]} : vector<64x578xf32> to vector<16x560xf32>
    %9 = arith.addf %7, %8 : vector<16x560xf32>
    %c0_3 = arith.constant 0 : index
    %c0_4 = arith.constant 0 : index
    %10 = vector.load %arg2[%c0_3, %c0_4] : memref<16x1xf32, #tpu.memory_space<vmem>>, vector<16x1xf32>
    %11 = vector.broadcast %10 : vector<16x1xf32> to vector<16x560xf32>
    %12 = arith.addf %9, %11 : vector<16x560xf32>
    %cst_5 = arith.constant 2.000000e-01 : f32
    %13 = vector.broadcast %cst_5 : f32 to vector<16x560xf32>
    %14 = arith.mulf %13, %12 : vector<16x560xf32>
    %15 = arith.maximumf %12, %14 : vector<16x560xf32>
    %c0_6 = arith.constant 0 : index
    %c0_7 = arith.constant 0 : index
    %16 = vector.load %arg3[%c0_6, %c0_7] : memref<16x560xf32, #tpu.memory_space<vmem>>, vector<16x560xf32>
    tpu.vector_store %arg3[%c0_6, %c0_7], %15 {strides = array<i32>} : memref<16x560xf32, #tpu.memory_space<vmem>>, vector<16x560xf32>,
    return
  }
}

module attributes {stable_mosaic.version = 11 : i64} {
  func.func @_conv_bn_act_kernel(%arg0: memref<64x162xbf16, #tpu.memory_space<vmem>>, %arg1: memref<128x64xbf16, #tpu.memory_space<vmem>>, %arg2: memref<32x1xf32, #tpu.memory_space<vmem>>, %arg3: memref<32x1xf32, #tpu.memory_space<vmem>>, %arg4: memref<1x152xf32, #tpu.memory_space<vmem>>, %arg5: memref<32x152xf32, #tpu.memory_space<vmem>>) attributes {dimension_semantics = [], scalar_prefetch = 0 : i64, scratch_operands = 0 : i64, tpu.core_type = #tpu.core_type<tc>} {
    %c0 = arith.constant 0 : index
    %c0_0 = arith.constant 0 : index
    %0 = vector.load %arg1[%c0, %c0_0] : memref<128x64xbf16, #tpu.memory_space<vmem>>, vector<128x64xbf16>
    %c0_1 = arith.constant 0 : index
    %c0_2 = arith.constant 0 : index
    %1 = vector.load %arg0[%c0_1, %c0_2] : memref<64x162xbf16, #tpu.memory_space<vmem>>, vector<64x162xbf16>
    %cst = arith.constant dense<0.000000e+00> : vector<128x162xf32>
    %2 = tpu.matmul %0, %1, %cst {dimension_numbers = #tpu.dot_dimension_numbers<[1], [0], [0], [1], [0, 0, 1, 1], [], []>} : vector<128x64xbf16>, vector<64x162xbf16>, vector<128x162xf32> -> vector<128x162xf32>
    %3 = vector.extract_strided_slice %2 {offsets = [0, 0], sizes = [32, 152], strides = [1, 1]} : vector<128x162xf32> to vector<32x152xf32>
    %4 = vector.extract_strided_slice %2 {offsets = [32, 1], sizes = [32, 152], strides = [1, 1]} : vector<128x162xf32> to vector<32x152xf32>
    %5 = arith.addf %3, %4 : vector<32x152xf32>
    %6 = vector.extract_strided_slice %2 {offsets = [64, 9], sizes = [32, 152], strides = [1, 1]} : vector<128x162xf32> to vector<32x152xf32>
    %7 = arith.addf %5, %6 : vector<32x152xf32>
    %8 = vector.extract_strided_slice %2 {offsets = [96, 10], sizes = [32, 152], strides = [1, 1]} : vector<128x162xf32> to vector<32x152xf32>
    %9 = arith.addf %7, %8 : vector<32x152xf32>
    %c0_3 = arith.constant 0 : index
    %c0_4 = arith.constant 0 : index
    %10 = vector.load %arg4[%c0_3, %c0_4] : memref<1x152xf32, #tpu.memory_space<vmem>>, vector<1x152xf32>
    %11 = vector.broadcast %10 : vector<1x152xf32> to vector<32x152xf32>
    %12 = arith.mulf %9, %11 : vector<32x152xf32>
    %cst_5 = arith.constant dense<0.000000e+00> : vector<32xf32>
    %13 = vector.multi_reduction <add>, %12, %cst_5 [1] : vector<32x152xf32> to vector<32xf32>
    %14 = vector.shape_cast %13 : vector<32xf32> to vector<32x1xf32>
    %cst_6 = arith.constant 7.812500e-03 : f32
    %15 = vector.broadcast %cst_6 : f32 to vector<32x1xf32>
    %16 = arith.mulf %14, %15 : vector<32x1xf32>
    %17 = vector.broadcast %16 : vector<32x1xf32> to vector<32x152xf32>
    %18 = arith.subf %9, %17 : vector<32x152xf32>
    %19 = arith.mulf %18, %18 : vector<32x152xf32>
    %20 = vector.broadcast %10 : vector<1x152xf32> to vector<32x152xf32>
    %21 = arith.mulf %19, %20 : vector<32x152xf32>
    %cst_7 = arith.constant dense<0.000000e+00> : vector<32xf32>
    %22 = vector.multi_reduction <add>, %21, %cst_7 [1] : vector<32x152xf32> to vector<32xf32>
    %23 = vector.shape_cast %22 : vector<32xf32> to vector<32x1xf32>
    %cst_8 = arith.constant 7.812500e-03 : f32
    %24 = vector.broadcast %cst_8 : f32 to vector<32x1xf32>
    %25 = arith.mulf %23, %24 : vector<32x1xf32>
    %c0_9 = arith.constant 0 : index
    %c0_10 = arith.constant 0 : index
    %26 = vector.load %arg2[%c0_9, %c0_10] : memref<32x1xf32, #tpu.memory_space<vmem>>, vector<32x1xf32>
    %cst_11 = arith.constant 9.99999974E-6 : f32
    %27 = vector.broadcast %cst_11 : f32 to vector<32x1xf32>
    %28 = arith.addf %25, %27 : vector<32x1xf32>
    %29 = math.rsqrt %28 : vector<32x1xf32>
    %30 = arith.mulf %26, %29 : vector<32x1xf32>
    %31 = vector.broadcast %30 : vector<32x1xf32> to vector<32x152xf32>
    %32 = arith.mulf %18, %31 : vector<32x152xf32>
    %c0_12 = arith.constant 0 : index
    %c0_13 = arith.constant 0 : index
    %33 = vector.load %arg3[%c0_12, %c0_13] : memref<32x1xf32, #tpu.memory_space<vmem>>, vector<32x1xf32>
    %34 = vector.broadcast %33 : vector<32x1xf32> to vector<32x152xf32>
    %35 = arith.addf %32, %34 : vector<32x152xf32>
    %cst_14 = arith.constant 2.000000e-01 : f32
    %36 = vector.broadcast %cst_14 : f32 to vector<32x152xf32>
    %37 = arith.mulf %36, %35 : vector<32x152xf32>
    %38 = arith.maximumf %35, %37 : vector<32x152xf32>
    %c0_15 = arith.constant 0 : index
    %c0_16 = arith.constant 0 : index
    %39 = vector.load %arg5[%c0_15, %c0_16] : memref<32x152xf32, #tpu.memory_space<vmem>>, vector<32x152xf32>
    tpu.vector_store %arg5[%c0_15, %c0_16], %38 {strides = array<i32>} : memref<32x152xf32, #tpu.memory_space<vmem>>, vector<32x152xf32>,
    return
  }
}

module attributes {stable_mosaic.version = 11 : i64} {
  func.func @_conv_bn_act_head_kernel(%arg0: memref<128x50xbf16, #tpu.memory_space<vmem>>, %arg1: memref<256x128xbf16, #tpu.memory_space<vmem>>, %arg2: memref<64x1xf32, #tpu.memory_space<vmem>>, %arg3: memref<64x1xf32, #tpu.memory_space<vmem>>, %arg4: memref<1x44xf32, #tpu.memory_space<vmem>>, %arg5: memref<2x64x44xf32, #tpu.memory_space<vmem>>, %arg6: memref<1x1xf32, #tpu.memory_space<vmem>>, %arg7: memref<1x2xf32, #tpu.memory_space<vmem>>) attributes {dimension_semantics = [], scalar_prefetch = 0 : i64, scratch_operands = 0 : i64, tpu.core_type = #tpu.core_type<tc>} {
    %c0 = arith.constant 0 : index
    %c0_0 = arith.constant 0 : index
    %0 = vector.load %arg1[%c0, %c0_0] : memref<256x128xbf16, #tpu.memory_space<vmem>>, vector<256x128xbf16>
    %c0_1 = arith.constant 0 : index
    %c0_2 = arith.constant 0 : index
    %1 = vector.load %arg0[%c0_1, %c0_2] : memref<128x50xbf16, #tpu.memory_space<vmem>>, vector<128x50xbf16>
    %cst = arith.constant dense<0.000000e+00> : vector<256x50xf32>
    %2 = tpu.matmul %0, %1, %cst {dimension_numbers = #tpu.dot_dimension_numbers<[1], [0], [0], [1], [0, 0, 1, 1], [], []>} : vector<256x128xbf16>, vector<128x50xbf16>, vector<256x50xf32> -> vector<256x50xf32>
    %3 = vector.extract_strided_slice %2 {offsets = [0, 0], sizes = [64, 44], strides = [1, 1]} : vector<256x50xf32> to vector<64x44xf32>
    %4 = vector.extract_strided_slice %2 {offsets = [64, 1], sizes = [64, 44], strides = [1, 1]} : vector<256x50xf32> to vector<64x44xf32>
    %5 = arith.addf %3, %4 : vector<64x44xf32>
    %6 = vector.extract_strided_slice %2 {offsets = [128, 5], sizes = [64, 44], strides = [1, 1]} : vector<256x50xf32> to vector<64x44xf32>
    %7 = arith.addf %5, %6 : vector<64x44xf32>
    %8 = vector.extract_strided_slice %2 {offsets = [192, 6], sizes = [64, 44], strides = [1, 1]} : vector<256x50xf32> to vector<64x44xf32>
    %9 = arith.addf %7, %8 : vector<64x44xf32>
    %c0_3 = arith.constant 0 : index
    %c0_4 = arith.constant 0 : index
    %10 = vector.load %arg4[%c0_3, %c0_4] : memref<1x44xf32, #tpu.memory_space<vmem>>, vector<1x44xf32>
    %11 = vector.broadcast %10 : vector<1x44xf32> to vector<64x44xf32>
    %12 = arith.mulf %9, %11 : vector<64x44xf32>
    %cst_5 = arith.constant dense<0.000000e+00> : vector<64xf32>
    %13 = vector.multi_reduction <add>, %12, %cst_5 [1] : vector<64x44xf32> to vector<64xf32>
    %14 = vector.shape_cast %13 : vector<64xf32> to vector<64x1xf32>
    %cst_6 = arith.constant 3.125000e-02 : f32
    %15 = vector.broadcast %cst_6 : f32 to vector<64x1xf32>
    %16 = arith.mulf %14, %15 : vector<64x1xf32>
    %17 = vector.broadcast %16 : vector<64x1xf32> to vector<64x44xf32>
    %18 = arith.subf %9, %17 : vector<64x44xf32>
    %19 = arith.mulf %18, %18 : vector<64x44xf32>
    %20 = vector.broadcast %10 : vector<1x44xf32> to vector<64x44xf32>
    %21 = arith.mulf %19, %20 : vector<64x44xf32>
    %cst_7 = arith.constant dense<0.000000e+00> : vector<64xf32>
    %22 = vector.multi_reduction <add>, %21, %cst_7 [1] : vector<64x44xf32> to vector<64xf32>
    %23 = vector.shape_cast %22 : vector<64xf32> to vector<64x1xf32>
    %cst_8 = arith.constant 3.125000e-02 : f32
    %24 = vector.broadcast %cst_8 : f32 to vector<64x1xf32>
    %25 = arith.mulf %23, %24 : vector<64x1xf32>
    %c0_9 = arith.constant 0 : index
    %c0_10 = arith.constant 0 : index
    %26 = vector.load %arg2[%c0_9, %c0_10] : memref<64x1xf32, #tpu.memory_space<vmem>>, vector<64x1xf32>
    %cst_11 = arith.constant 9.99999974E-6 : f32
    %27 = vector.broadcast %cst_11 : f32 to vector<64x1xf32>
    %28 = arith.addf %25, %27 : vector<64x1xf32>
    %29 = math.rsqrt %28 : vector<64x1xf32>
    %30 = arith.mulf %26, %29 : vector<64x1xf32>
    %31 = vector.broadcast %30 : vector<64x1xf32> to vector<64x44xf32>
    %32 = arith.mulf %18, %31 : vector<64x44xf32>
    %c0_12 = arith.constant 0 : index
    %c0_13 = arith.constant 0 : index
    %33 = vector.load %arg3[%c0_12, %c0_13] : memref<64x1xf32, #tpu.memory_space<vmem>>, vector<64x1xf32>
    %34 = vector.broadcast %33 : vector<64x1xf32> to vector<64x44xf32>
    %35 = arith.addf %32, %34 : vector<64x44xf32>
    %cst_14 = arith.constant 2.000000e-01 : f32
    %36 = vector.broadcast %cst_14 : f32 to vector<64x44xf32>
    %37 = arith.mulf %36, %35 : vector<64x44xf32>
    %38 = arith.maximumf %35, %37 : vector<64x44xf32>
    %c0_15 = arith.constant 0 : index
    %c0_16 = arith.constant 0 : index
    %c0_17 = arith.constant 0 : index
    %39 = vector.load %arg5[%c0_15, %c0_16, %c0_17] : memref<2x64x44xf32, #tpu.memory_space<vmem>>, vector<1x64x44xf32>
    %40 = vector.shape_cast %39 : vector<1x64x44xf32> to vector<64x44xf32>
    %41 = arith.mulf %38, %40 : vector<64x44xf32>
    %cst_18 = arith.constant dense<0.000000e+00> : vector<64xf32>
    %42 = vector.multi_reduction <add>, %41, %cst_18 [1] : vector<64x44xf32> to vector<64xf32>
    %43 = vector.shape_cast %42 : vector<64xf32> to vector<64x1xf32>
    %cst_19 = arith.constant dense<0.000000e+00> : vector<1xf32>
    %44 = vector.multi_reduction <add>, %43, %cst_19 [0] : vector<64x1xf32> to vector<1xf32>
    %45 = vector.shape_cast %44 : vector<1xf32> to vector<1x1xf32>
    %c1 = arith.constant 1 : index
    %c0_20 = arith.constant 0 : index
    %c0_21 = arith.constant 0 : index
    %46 = vector.load %arg5[%c1, %c0_20, %c0_21] : memref<2x64x44xf32, #tpu.memory_space<vmem>>, vector<1x64x44xf32>
    %47 = vector.shape_cast %46 : vector<1x64x44xf32> to vector<64x44xf32>
    %48 = arith.mulf %38, %47 : vector<64x44xf32>
    %cst_22 = arith.constant dense<0.000000e+00> : vector<64xf32>
    %49 = vector.multi_reduction <add>, %48, %cst_22 [1] : vector<64x44xf32> to vector<64xf32>
    %50 = vector.shape_cast %49 : vector<64xf32> to vector<64x1xf32>
    %cst_23 = arith.constant dense<0.000000e+00> : vector<1xf32>
    %51 = vector.multi_reduction <add>, %50, %cst_23 [0] : vector<64x1xf32> to vector<1xf32>
    %52 = vector.shape_cast %51 : vector<1xf32> to vector<1x1xf32>
    %53 = tpu.concatenate %45, %52 in 1 : vector<1x1xf32>, vector<1x1xf32> -> vector<1x2xf32>
    %c0_24 = arith.constant 0 : index
    %c0_25 = arith.constant 0 : index
    %54 = vector.load %arg6[%c0_24, %c0_25] : memref<1x1xf32, #tpu.memory_space<vmem>>, vector<1x1xf32>
    %55 = vector.broadcast %54 : vector<1x1xf32> to vector<1x2xf32>
    %56 = arith.addf %53, %55 : vector<1x2xf32>
    %cst_26 = arith.constant 0.000000e+00 : f32
    %57 = vector.broadcast %cst_26 : f32 to vector<1x2xf32>
    %58 = arith.subf %57, %56 : vector<1x2xf32>
    %59 = math.exp %58 : vector<1x2xf32>
    %cst_27 = arith.constant 1.000000e+00 : f32
    %60 = vector.broadcast %cst_27 : f32 to vector<1x2xf32>
    %61 = arith.addf %60, %59 : vector<1x2xf32>
    %cst_28 = arith.constant 1.000000e+00 : f32
    %62 = vector.broadcast %cst_28 : f32 to vector<1x2xf32>
    %63 = arith.divf %62, %61 : vector<1x2xf32>
    %c0_29 = arith.constant 0 : index
    %c0_30 = arith.constant 0 : index
    %64 = vector.load %arg7[%c0_29, %c0_30] : memref<1x2xf32, #tpu.memory_space<vmem>>, vector<1x2xf32>
    tpu.vector_store %arg7[%c0_29, %c0_30], %63 {strides = array<i32>} : memref<1x2xf32, #tpu.memory_space<vmem>>, vector<1x2xf32>,
    return
  }
}

</mosaic_0001>

<llo_original>
// kernel: _forward.3
$region0: #{_forward.3}
  #allocation0 [shape = 'u32[]', space=smem, size = 0x4, offset = 0x4, fixed_abs, tag = 'smem constant byte address 0x4 - core index']
  #allocation1 [shape = 'u32[144,128]{1,0:T(1,128)}', space=vmem, size = 0x12000, scoped, tag = 'internal scratch']
  %s0 = inlined_call_operand.vmem [shape: bf16[44,578], index: 0, kind: input, shape index: {}]
  %s1 = inlined_call_operand.vmem [shape: bf16[64,44], index: 1, kind: input, shape index: {}]
  %s2 = inlined_call_operand.vmem [shape: f32[16,1], index: 2, kind: input, shape index: {}]
  %s3 = inlined_call_operand.vmem [shape: f32[16,560], index: 3, kind: output, shape index: {}]
  %s4 = sld [smem:[#allocation0]]
  $region22: #{_forward.3} parent=0
    _
  %s6 = ssub.s32 1, %s4
  %s7 = scalar_select 0, %s6, %s4
  // Predicated region
  $region2: #{_forward.3} parent=0 // pred_check
    _
  $region3: #{_forward.3} parent=0 // pred_check_branch
    %9 = sbr.rel (0) target = $region5
  $region4: #{_forward.3} parent=0 // pred_region
    _
  $region5: #{_forward.3} parent=0 // pred_fallthru
    _
  // Predicated region
  $region6: #{_forward.3} parent=0 // pred_check
    _
  $region7: #{_forward.3} parent=0 // pred_check_branch
    %11 = sbr.rel (0) target = $region9
  $region8: #{_forward.3} parent=0 // pred_region
    _
  $region9: #{_forward.3} parent=0 // pred_fallthru
    _
  // Predicated region
  $region10: #{_forward.3} parent=0 // pred_check
    _
  $region11: #{_forward.3} parent=0 // pred_check_branch
    %13 = sbr.rel (0) target = $region13
  $region12: #{_forward.3} parent=0 // pred_region
    _
  $region13: #{_forward.3} parent=0 // pred_fallthru
    _
  %v15 = vld [vmem:[%s1] sm:$0xf]
  %v16 = vld [vmem:[%s1 + $0x4] sm:$0xf]
  %v17 = vld [vmem:[%s1 + $0x8] sm:$0xf]
  %v18 = vld [vmem:[%s1 + $0xc] sm:$0xf]
  %v19 = vld [vmem:[%s1 + $0x10] sm:$0xf]
  %v20 = vld [vmem:[%s1 + $0x14] sm:$0xf]
  %v21 = vld [vmem:[%s1 + $0x18] sm:$0xf]
  %v22 = vld [vmem:[%s1 + $0x1c] sm:$0xf]
  %v23 = vld [vmem:[%s0] sm:$0xff]
  %v24 = vld [vmem:[%s0 + $0x8] sm:$0xff]
  %v25 = vld [vmem:[%s0 + $0x10] sm:$0xf]
  %v26 = vld [vmem:[%s0 + $0x14] sm:$0xff]
  %v27 = vld [vmem:[%s0 + $0x1c] sm:$0xff]
  %v28 = vld [vmem:[%s0 + $0x24] sm:$0xf]
  %v29 = vld [vmem:[%s0 + $0x28] sm:$0xff]
  %v30 = vld [vmem:[%s0 + $0x30] sm:$0xff]
  %v31 = vld [vmem:[%s0 + $0x38] sm:$0xf]
  %v32 = vld [vmem:[%s0 + $0x3c] sm:$0xff]
  %v33 = vld [vmem:[%s0 + $0x44] sm:$0xff]
  %v34 = vld [vmem:[%s0 + $0x4c] sm:$0xf]
  %v35 = vld [vmem:[%s0 + $0x50] sm:$0xff]
  %v36 = vld [vmem:[%s0 + $0x58] sm:$0xff]
  %v37 = vld [vmem:[%s0 + $0x60] sm:$0xf]
  %v38 = vld [vmem:[%s0 + $0x64] sm:$0x33]
  %v39 = vld [vmem:[%s0 + $0x6c] sm:$0x33]
  %v40 = vld [vmem:[%s0 + $0x74] sm:$0x3]
  %v49 = vunpack.c.l.b16 %v15
  %v50 = vunpack.c.l.b16 %v16
  %v51 = vunpack.c.l.b16 %v17
  %v52 = vunpack.c.l.b16 %v18
  %v53 = vunpack.c.l.b16 %v19
  %v54 = vunpack.c.l.b16 %v20
  %v55 = vunpack.c.l.b16 %v21
  %v56 = vunpack.c.l.b16 %v22
  %v57 = vpack.c.b16 %v50, %v49
  %v58 = vpack.c.b16 %v52, %v51
  %v59 = vpack.c.b16 %v54, %v53
  %v60 = vpack.c.b16 %v56, %v55
  %v79 = vunpack.c.l.b16 %v23
  %v80 = vunpack.c.h.b16 %v23
  %v81 = vunpack.c.l.b16 %v24
  %v82 = vunpack.c.h.b16 %v24
  %v83 = vunpack.c.l.b16 %v25
  %v84 = vunpack.c.l.b16 %v26
  %v85 = vunpack.c.h.b16 %v26
  %v86 = vunpack.c.l.b16 %v27
  %v87 = vunpack.c.h.b16 %v27
  %v88 = vunpack.c.l.b16 %v28
  %v89 = vunpack.c.l.b16 %v29
  %v90 = vunpack.c.h.b16 %v29
  %v91 = vunpack.c.l.b16 %v30
  %v92 = vunpack.c.h.b16 %v30
  %v93 = vunpack.c.l.b16 %v31
  %v94 = vunpack.c.l.b16 %v32
  %v95 = vunpack.c.h.b16 %v32
  %v96 = vunpack.c.l.b16 %v33
  %v97 = vunpack.c.h.b16 %v33
  %v98 = vunpack.c.l.b16 %v34
  %v99 = vunpack.c.l.b16 %v35
  %v100 = vunpack.c.h.b16 %v35
  %v101 = vunpack.c.l.b16 %v36
  %v102 = vunpack.c.h.b16 %v36
  %v103 = vunpack.c.l.b16 %v37
  %v104 = vunpack.c.l.b16 %v38
  %v105 = vunpack.c.h.b16 %v38
  %v106 = vunpack.c.l.b16 %v39
  %v107 = vunpack.c.h.b16 %v39
  %v108 = vunpack.c.l.b16 %v40
  %v109 = vpack.c.b16 %v84, %v79
  %v110 = vpack.c.b16 %v85, %v80
  %v111 = vpack.c.b16 %v86, %v81
  %v112 = vpack.c.b16 %v87, %v82
  %v113 = vpack.c.b16 %v88, %v83
  %v114 = vpack.c.b16 %v94, %v89
  %v115 = vpack.c.b16 %v95, %v90
  %v116 = vpack.c.b16 %v96, %v91
  %v117 = vpack.c.b16 %v97, %v92
  %v118 = vpack.c.b16 %v98, %v93
  %v119 = vpack.c.b16 %v104, %v99
  %v120 = vpack.c.b16 %v105, %v100
  %v121 = vpack.c.b16 %v106, %v101
  %v122 = vpack.c.b16 %v107, %v102
  %v123 = vpack.c.b16 %v108, %v103
  %vm134 = vcmask 359424
  %v136 = vsel %vm134, %v57, 0
  %v139 = vsel %vm134, %v58, 0
  %v142 = vsel %vm134, %v59, 0
  %v145 = vsel %vm134, %v60, 0
  %vm147 = vcmask 1045504
  %v149 = vsel %vm147, %v119, 0
  %v152 = vsel %vm147, %v120, 0
  %v155 = vsel %vm147, %v121, 0
  %v158 = vsel %vm147, %v122, 0
  %v161 = vsel %vm147, %v123, 0
  %163 = vmatprep.subr.bf16.mxu0 0
  %164 = vmatpush1.bf16.msra.mxu0 0
  %165 = vmatprep.subr.bf16.mxu0 0
  %166 = vmatpush1.bf16.msra.mxu0 0
  %167 = vmatprep.subr.bf16.mxu0 0
  %168 = vmatpush1.bf16.msra.mxu0 0
  %169 = vmatprep.subr.bf16.mxu0 0
  %170 = vmatpush1.bf16.msra.mxu0 0
  %171 = vmatprep.subr.bf16.mxu0 0
  %172 = vmatpush1.bf16.msra.mxu0 0
  %173 = vmatprep.subr.bf16.mxu0 %v152
  %174 = vmatpush1.bf16.msra.mxu0 %v149
  %175 = vmatprep.subr.bf16.mxu0 %v115
  %176 = vmatpush1.bf16.msra.mxu0 %v114
  %177 = vmatprep.subr.bf16.mxu0 %v110
  %178 = vmatpush1.bf16.msra.mxu0 %v109
  %179 = vmatprep.subr.bf16.mxu0 0
  %180 = vmatpush2.bf16.msra.mxu0 0
  %181 = vmatprep.subr.bf16.mxu0 0
  %182 = vmatpush2.bf16.msra.mxu0 0
  %183 = vmatprep.subr.bf16.mxu0 0
  %184 = vmatpush2.bf16.msra.mxu0 0
  %185 = vmatprep.subr.bf16.mxu0 0
  %186 = vmatpush2.bf16.msra.mxu0 0
  %187 = vmatprep.subr.bf16.mxu0 0
  %188 = vmatpush2.bf16.msra.mxu0 0
  %189 = vmatprep.subr.bf16.mxu0 0
  %190 = vmatpush2.bf16.msra.mxu0 0
  %191 = vmatprep.subr.bf16.mxu0 0
  %192 = vmatpush2.bf16.msra.mxu0 0
  %193 = vmatprep.subr.bf16.mxu0 0
  %194 = vmatpush2.bf16.msra.mxu0 0
  %195 = vmatprep.mubr.bf16.mxu0 0
  %196 = vmatmul.mubr.bf16.gmra.mxu0 %v136
  %v197 = vpop.f32.mrf.mxu0
  %v198 = vadd.f32 0.0, %v197
  %v199 = vpop.f32.mrf.mxu0
  %v200 = vadd.f32 0.0, %v199
  %v201 = vpop.f32.mrf.mxu0
  %v202 = vadd.f32 0.0, %v201
  %v203 = vpop.f32.mrf.mxu0
  %v204 = vadd.f32 0.0, %v203
  %205 = vmatprep.mubr.bf16.mxu0 0
  %206 = vmatmul.mubr.bf16.gmra.mxu0 %v139
  %v207 = vpop.f32.mrf.mxu0
  %v208 = vadd.f32 0.0, %v207
  %v209 = vpop.f32.mrf.mxu0
  %v210 = vadd.f32 0.0, %v209
  %v211 = vpop.f32.mrf.mxu0
  %v212 = vadd.f32 0.0, %v211
  %v213 = vpop.f32.mrf.mxu0
  %v214 = vadd.f32 0.0, %v213
  %215 = vmatprep.mubr.bf16.mxu0 0
  %216 = vmatmul.mubr.bf16.gmra.mxu0 %v142
  %v217 = vpop.f32.mrf.mxu0
  %v218 = vadd.f32 0.0, %v217
  %v219 = vpop.f32.mrf.mxu0
  %v220 = vadd.f32 0.0, %v219
  %v221 = vpop.f32.mrf.mxu0
  %v222 = vadd.f32 0.0, %v221
  %v223 = vpop.f32.mrf.mxu0
  %v224 = vadd.f32 0.0, %v223
  %225 = vmatprep.mubr.bf16.mxu0 0
  %226 = vmatmul.mubr.bf16.gmra.mxu0 %v145
  %v227 = vpop.f32.mrf.mxu0
  %v228 = vadd.f32 0.0, %v227
  %v229 = vpop.f32.mrf.mxu0
  %v230 = vadd.f32 0.0, %v229
  %v231 = vpop.f32.mrf.mxu0
  %v232 = vadd.f32 0.0, %v231
  %v233 = vpop.f32.mrf.mxu0
  %v234 = vadd.f32 0.0, %v233
  %235 = vdwg.mxu0
  %236 = vmatprep.subr.bf16.mxu0 0
  %237 = vmatpush1.bf16.msra.mxu0 0
  %238 = vmatprep.subr.bf16.mxu0 0
  %239 = vmatpush1.bf16.msra.mxu0 0
  %240 = vmatprep.subr.bf16.mxu0 0
  %241 = vmatpush1.bf16.msra.mxu0 0
  %242 = vmatprep.subr.bf16.mxu0 0
  %243 = vmatpush1.bf16.msra.mxu0 0
  %244 = vmatprep.subr.bf16.mxu0 0
  %245 = vmatpush1.bf16.msra.mxu0 0
  %246 = vmatprep.subr.bf16.mxu0 %v158
  %247 = vmatpush1.bf16.msra.mxu0 %v155
  %248 = vmatprep.subr.bf16.mxu0 %v117
  %249 = vmatpush1.bf16.msra.mxu0 %v116
  %250 = vmatprep.subr.bf16.mxu0 %v112
  %251 = vmatpush1.bf16.msra.mxu0 %v111
  %252 = vmatprep.subr.bf16.mxu0 0
  %253 = vmatpush2.bf16.msra.mxu0 0
  %254 = vmatprep.subr.bf16.mxu0 0
  %255 = vmatpush2.bf16.msra.mxu0 0
  %256 = vmatprep.subr.bf16.mxu0 0
  %257 = vmatpush2.bf16.msra.mxu0 0
  %258 = vmatprep.subr.bf16.mxu0 0
  %259 = vmatpush2.bf16.msra.mxu0 0
  %260 = vmatprep.subr.bf16.mxu0 0
  %261 = vmatpush2.bf16.msra.mxu0 0
  %262 = vmatprep.subr.bf16.mxu0 0
  %263 = vmatpush2.bf16.msra.mxu0 0
  %264 = vmatprep.subr.bf16.mxu0 0
  %265 = vmatpush2.bf16.msra.mxu0 0
  %266 = vmatprep.subr.bf16.mxu0 0
  %267 = vmatpush2.bf16.msra.mxu0 0
  %268 = vmatprep.mubr.bf16.mxu0 0
  %269 = vmatmul.mubr.bf16.gmra.mxu0 %v136
  %v270 = vpop.f32.mrf.mxu0
  %v271 = vadd.f32 0.0, %v270
  %v272 = vpop.f32.mrf.mxu0
  %v273 = vadd.f32 0.0, %v272
  %v274 = vpop.f32.mrf.mxu0
  %v275 = vadd.f32 0.0, %v274
  %v276 = vpop.f32.mrf.mxu0
  %v277 = vadd.f32 0.0, %v276
  %278 = vmatprep.mubr.bf16.mxu0 0
  %279 = vmatmul.mubr.bf16.gmra.mxu0 %v139
  %v280 = vpop.f32.mrf.mxu0
  %v281 = vadd.f32 0.0, %v280
  %v282 = vpop.f32.mrf.mxu0
  %v283 = vadd.f32 0.0, %v282
  %v284 = vpop.f32.mrf.mxu0
  %v285 = vadd.f32 0.0, %v284
  %v286 = vpop.f32.mrf.mxu0
  %v287 = vadd.f32 0.0, %v286
  %288 = vmatprep.mubr.bf16.mxu0 0
  %289 = vmatmul.mubr.bf16.gmra.mxu0 %v142
  %v290 = vpop.f32.mrf.mxu0
  %v291 = vadd.f32 0.0, %v290
  %v292 = vpop.f32.mrf.mxu0
  %v293 = vadd.f32 0.0, %v292
  %v294 = vpop.f32.mrf.mxu0
  %v295 = vadd.f32 0.0, %v294
  %v296 = vpop.f32.mrf.mxu0
  %v297 = vadd.f32 0.0, %v296
  %298 = vmatprep.mubr.bf16.mxu0 0
  %299 = vmatmul.mubr.bf16.gmra.mxu0 %v145
  %v300 = vpop.f32.mrf.mxu0
  %v301 = vadd.f32 0.0, %v300
  %v302 = vpop.f32.mrf.mxu0
  %v303 = vadd.f32 0.0, %v302
  %v304 = vpop.f32.mrf.mxu0
  %v305 = vadd.f32 0.0, %v304
  %v306 = vpop.f32.mrf.mxu0
  %v307 = vadd.f32 0.0, %v306
  %308 = vdwg.mxu0
  %309 = vmatprep.subr.bf16.mxu0 0
  %310 = vmatpush1.bf16.msra.mxu0 0
  %311 = vmatprep.subr.bf16.mxu0 0
  %312 = vmatpush1.bf16.msra.mxu0 0
  %313 = vmatprep.subr.bf16.mxu0 0
  %314 = vmatpush1.bf16.msra.mxu0 0
  %315 = vmatprep.subr.bf16.mxu0 0
  %316 = vmatpush1.bf16.msra.mxu0 0
  %317 = vmatprep.subr.bf16.mxu0 0
  %318 = vmatpush1.bf16.msra.mxu0 0
  %319 = vmatprep.subr.bf16.mxu0 0
  %320 = vmatpush1.bf16.msra.mxu0 %v161
  %321 = vmatprep.subr.bf16.mxu0 0
  %322 = vmatpush1.bf16.msra.mxu0 %v118
  %323 = vmatprep.subr.bf16.mxu0 0
  %324 = vmatpush1.bf16.msra.mxu0 %v113
  %325 = vmatprep.subr.bf16.mxu0 0
  %326 = vmatpush2.bf16.msra.mxu0 0
  %327 = vmatprep.subr.bf16.mxu0 0
  %328 = vmatpush2.bf16.msra.mxu0 0
  %329 = vmatprep.subr.bf16.mxu0 0
  %330 = vmatpush2.bf16.msra.mxu0 0
  %331 = vmatprep.subr.bf16.mxu0 0
  %332 = vmatpush2.bf16.msra.mxu0 0
  %333 = vmatprep.subr.bf16.mxu0 0
  %334 = vmatpush2.bf16.msra.mxu0 0
  %335 = vmatprep.subr.bf16.mxu0 0
  %336 = vmatpush2.bf16.msra.mxu0 0
  %337 = vmatprep.subr.bf16.mxu0 0
  %338 = vmatpush2.bf16.msra.mxu0 0
  %339 = vmatprep.subr.bf16.mxu0 0
  %340 = vmatpush2.bf16.msra.mxu0 0
  %341 = vmatprep.mubr.bf16.mxu0 0
  %342 = vmatmul.mubr.bf16.gmra.mxu0 %v136
  %v343 = vpop.f32.mrf.mxu0
  %v344 = vadd.f32 0.0, %v343
  %v345 = vpop.f32.mrf.mxu0
  %v346 = vpop.f32.mrf.mxu0
  %v347 = vadd.f32 0.0, %v346
  %v348 = vpop.f32.mrf.mxu0
  %349 = vmatprep.mubr.bf16.mxu0 0
  %350 = vmatmul.mubr.bf16.gmra.mxu0 %v139
  %v351 = vpop.f32.mrf.mxu0
  %v352 = vadd.f32 0.0, %v351
  %v353 = vpop.f32.mrf.mxu0
  %v354 = vpop.f32.mrf.mxu0
  %v355 = vadd.f32 0.0, %v354
  %v356 = vpop.f32.mrf.mxu0
  %357 = vmatprep.mubr.bf16.mxu0 0
  %358 = vmatmul.mubr.bf16.gmra.mxu0 %v142
  %v359 = vpop.f32.mrf.mxu0
  %v360 = vadd.f32 0.0, %v359
  %v361 = vpop.f32.mrf.mxu0
  %v362 = vpop.f32.mrf.mxu0
  %v363 = vadd.f32 0.0, %v362
  %v364 = vpop.f32.mrf.mxu0
  %365 = vmatprep.mubr.bf16.mxu0 0
  %366 = vmatmul.mubr.bf16.gmra.mxu0 %v145
  %v367 = vpop.f32.mrf.mxu0
  %v368 = vadd.f32 0.0, %v367
  %v369 = vpop.f32.mrf.mxu0
  %v370 = vpop.f32.mrf.mxu0
  %v371 = vadd.f32 0.0, %v370
  %v372 = vpop.f32.mrf.mxu0
  %373 = vdwg.mxu0
  %384 = vrot.lane.b32.xlu0 %v208, 127
  %v385 = vpop.permute.xlu0 %384
  %386 = vrot.lane.b32.xlu0 %v210, 127
  %v387 = vpop.permute.xlu0 %386
  %388 = vrot.lane.b32.xlu0 %v281, 127
  %v389 = vpop.permute.xlu0 %388
  %390 = vrot.lane.b32.xlu0 %v283, 127
  %v391 = vpop.permute.xlu0 %390
  %392 = vrot.lane.b32.xlu0 %v352, 127
  %v393 = vpop.permute.xlu0 %392
  %394 = vrot.lane.b32.xlu0 %v212, 127
  %v395 = vpop.permute.xlu0 %394
  %396 = vrot.lane.b32.xlu0 %v214, 127
  %v397 = vpop.permute.xlu0 %396
  %398 = vrot.lane.b32.xlu0 %v285, 127
  %v399 = vpop.permute.xlu0 %398
  %400 = vrot.lane.b32.xlu0 %v287, 127
  %v401 = vpop.permute.xlu0 %400
  %402 = vrot.lane.b32.xlu0 %v355, 127
  %v403 = vpop.permute.xlu0 %402
  %vm404 = vcmask 1039360
  %v405 = vsel %vm404, %v385, %v387
  %v406 = vsel %vm404, %v387, %v389
  %v407 = vsel %vm404, %v389, %v391
  %v408 = vsel %vm404, %v391, %v393
  %v409 = vsel %vm404, %v395, %v397
  %v410 = vsel %vm404, %v397, %v399
  %v411 = vsel %vm404, %v399, %v401
  %v412 = vsel %vm404, %v401, %v403
  %v423 = vadd.f32 %v198, %v405
  %v424 = vadd.f32 %v200, %v406
  %v425 = vadd.f32 %v271, %v407
  %v426 = vadd.f32 %v273, %v408
  %v427 = vadd.f32 %v344, %v393
  %v428 = vadd.f32 %v202, %v409
  %v429 = vadd.f32 %v204, %v410
  %v430 = vadd.f32 %v275, %v411
  %v431 = vadd.f32 %v277, %v412
  %v432 = vadd.f32 %v347, %v403
  %443 = vrot.lane.b32.xlu0 %v218, 111
  %v444 = vpop.permute.xlu0 %443
  %445 = vrot.lane.b32.xlu0 %v220, 111
  %v446 = vpop.permute.xlu0 %445
  %447 = vrot.lane.b32.xlu0 %v291, 111
  %v448 = vpop.permute.xlu0 %447
  %449 = vrot.lane.b32.xlu0 %v293, 111
  %v450 = vpop.permute.xlu0 %449
  %451 = vrot.lane.b32.xlu0 %v360, 111
  %v452 = vpop.permute.xlu0 %451
  %453 = vrot.lane.b32.xlu0 %v222, 111
  %v454 = vpop.permute.xlu0 %453
  %455 = vrot.lane.b32.xlu0 %v224, 111
  %v456 = vpop.permute.xlu0 %455
  %457 = vrot.lane.b32.xlu0 %v295, 111
  %v458 = vpop.permute.xlu0 %457
  %459 = vrot.lane.b32.xlu0 %v297, 111
  %v460 = vpop.permute.xlu0 %459
  %461 = vrot.lane.b32.xlu0 %v363, 111
  %v462 = vpop.permute.xlu0 %461
  %vm463 = vcmask 908288
  %v464 = vsel %vm463, %v444, %v446
  %v465 = vsel %vm463, %v446, %v448
  %v466 = vsel %vm463, %v448, %v450
  %v467 = vsel %vm463, %v450, %v452
  %v468 = vsel %vm463, %v454, %v456
  %v469 = vsel %vm463, %v456, %v458
  %v470 = vsel %vm463, %v458, %v460
  %v471 = vsel %vm463, %v460, %v462
  %v482 = vadd.f32 %v423, %v464
  %v483 = vadd.f32 %v424, %v465
  %v484 = vadd.f32 %v425, %v466
  %v485 = vadd.f32 %v426, %v467
  %v486 = vadd.f32 %v427, %v452
  %v487 = vadd.f32 %v428, %v468
  %v488 = vadd.f32 %v429, %v469
  %v489 = vadd.f32 %v430, %v470
  %v490 = vadd.f32 %v431, %v471
  %v491 = vadd.f32 %v432, %v462
  %502 = vrot.lane.b32.xlu0 %v228, 110
  %v503 = vpop.permute.xlu0 %502
  %504 = vrot.lane.b32.xlu0 %v230, 110
  %v505 = vpop.permute.xlu0 %504
  %506 = vrot.lane.b32.xlu0 %v301, 110
  %v507 = vpop.permute.xlu0 %506
  %508 = vrot.lane.b32.xlu0 %v303, 110
  %v509 = vpop.permute.xlu0 %508
  %510 = vrot.lane.b32.xlu0 %v368, 110
  %v511 = vpop.permute.xlu0 %510
  %512 = vrot.lane.b32.xlu0 %v232, 110
  %v513 = vpop.permute.xlu0 %512
  %514 = vrot.lane.b32.xlu0 %v234, 110
  %v515 = vpop.permute.xlu0 %514
  %516 = vrot.lane.b32.xlu0 %v305, 110
  %v517 = vpop.permute.xlu0 %516
  %518 = vrot.lane.b32.xlu0 %v307, 110
  %v519 = vpop.permute.xlu0 %518
  %520 = vrot.lane.b32.xlu0 %v371, 110
  %v521 = vpop.permute.xlu0 %520
  %vm522 = vcmask 900096
  %v523 = vsel %vm522, %v503, %v505
  %v524 = vsel %vm522, %v505, %v507
  %v525 = vsel %vm522, %v507, %v509
  %v526 = vsel %vm522, %v509, %v511
  %v527 = vsel %vm522, %v513, %v515
  %v528 = vsel %vm522, %v515, %v517
  %v529 = vsel %vm522, %v517, %v519
  %v530 = vsel %vm522, %v519, %v521
  %v541 = vadd.f32 %v482, %v523
  %v542 = vadd.f32 %v483, %v524
  %v543 = vadd.f32 %v484, %v525
  %v544 = vadd.f32 %v485, %v526
  %v545 = vadd.f32 %v486, %v511
  %v546 = vadd.f32 %v487, %v527
  %v547 = vadd.f32 %v488, %v528
  %v548 = vadd.f32 %v489, %v529
  %v549 = vadd.f32 %v490, %v530
  %v550 = vadd.f32 %v491, %v521
  %v551 = vld [vmem:[%s2] sm:$0xff]
  %v552 = vld [vmem:[%s2 + $0x8] sm:$0xff]
  %554 = vset.pattern.permute.xlu0 0
  %555 = vperm.xlu0 %554, %v551
  %v556 = vpop.permute.xlu0 %555
  %559 = vset.pattern.permute.xlu0 0
  %560 = vperm.xlu0 %559, %v552
  %v561 = vpop.permute.xlu0 %560
  %v563 = vadd.f32 %v541, %v556
  %v564 = vadd.f32 %v542, %v556
  %v565 = vadd.f32 %v543, %v556
  %v566 = vadd.f32 %v544, %v556
  %v567 = vadd.f32 %v545, %v556
  %v568 = vadd.f32 %v546, %v561
  %v569 = vadd.f32 %v547, %v561
  %v570 = vadd.f32 %v548, %v561
  %v571 = vadd.f32 %v549, %v561
  %v572 = vadd.f32 %v550, %v561
  %v573 = vmul.f32 %v563, 0.2
  %v574 = vmul.f32 %v564, 0.2
  %v575 = vmul.f32 %v565, 0.2
  %v576 = vmul.f32 %v566, 0.2
  %v577 = vmul.f32 %v567, 0.2
  %v578 = vmul.f32 %v568, 0.2
  %v579 = vmul.f32 %v569, 0.2
  %v580 = vmul.f32 %v570, 0.2
  %v581 = vmul.f32 %v571, 0.2
  %v582 = vmul.f32 %v572, 0.2
  %v583 = vmax.f32 %v563, %v573
  %v584 = vmax.f32 %v564, %v574
  %v585 = vmax.f32 %v565, %v575
  %v586 = vmax.f32 %v566, %v576
  %v587 = vmax.f32 %v567, %v577
  %v588 = vmax.f32 %v568, %v578
  %v589 = vmax.f32 %v569, %v579
  %v590 = vmax.f32 %v570, %v580
  %v591 = vmax.f32 %v571, %v581
  %v592 = vmax.f32 %v572, %v582
  %593 = vst [vmem:[%s3] sm:$0xff] %v583
  %594 = vst [vmem:[%s3 + $0x8] sm:$0xff] %v584
  %595 = vst [vmem:[%s3 + $0x10] sm:$0xff] %v585
  %596 = vst [vmem:[%s3 + $0x18] sm:$0xff] %v586
  %vm597 = vcmask 392192
  %598 = vst.msk [vmem:[%s3 + $0x20] sm:$0xff] %vm597, %v587
  %599 = vst [vmem:[%s3 + $0x28] sm:$0xff] %v588
  %600 = vst [vmem:[%s3 + $0x30] sm:$0xff] %v589
  %601 = vst [vmem:[%s3 + $0x38] sm:$0xff] %v590
  %602 = vst [vmem:[%s3 + $0x40] sm:$0xff] %v591
  %603 = vst.msk [vmem:[%s3 + $0x48] sm:$0xff] %vm597, %v592
  // Predicated region
  $region14: #{_forward.3} parent=0 // pred_check
    _
  $region15: #{_forward.3} parent=0 // pred_check_branch
    %605 = sbr.rel (0) target = $region17
  $region16: #{_forward.3} parent=0 // pred_region
    _
  $region17: #{_forward.3} parent=0 // pred_fallthru
    _
  // Predicated region
  $region18: #{_forward.3} parent=0 // pred_check
    _
  $region19: #{_forward.3} parent=0 // pred_check_branch
    %607 = sbr.rel (0) target = $region21
  $region20: #{_forward.3} parent=0 // pred_region
    _
  $region21: #{_forward.3} parent=0 // pred_fallthru
    _

// kernel: _forward.4
$region0: #{_forward.4}
  #allocation0 [shape = 'u32[]', space=smem, size = 0x4, offset = 0x4, fixed_abs, tag = 'smem constant byte address 0x4 - core index']
  #allocation1 [shape = 'u32[144,128]{1,0:T(1,128)}', space=vmem, size = 0x12000, scoped, tag = 'internal scratch']
  %s0 = inlined_call_operand.vmem [shape: bf16[64,162], index: 0, kind: input, shape index: {}]
  %s1 = inlined_call_operand.vmem [shape: bf16[128,64], index: 1, kind: input, shape index: {}]
  %s2 = inlined_call_operand.vmem [shape: f32[32,1], index: 2, kind: input, shape index: {}]
  %s3 = inlined_call_operand.vmem [shape: f32[32,1], index: 3, kind: input, shape index: {}]
  %s4 = inlined_call_operand.vmem [shape: f32[1,152], index: 4, kind: input, shape index: {}]
  %s5 = inlined_call_operand.vmem [shape: f32[32,152], index: 5, kind: output, shape index: {}]
  %s6 = sld [smem:[#allocation0]]
  $region30: #{_forward.4} parent=0
    _
  %s8 = ssub.s32 1, %s6
  %s9 = scalar_select 0, %s8, %s6
  // Predicated region
  $region2: #{_forward.4} parent=0 // pred_check
    _
  $region3: #{_forward.4} parent=0 // pred_check_branch
    %11 = sbr.rel (0) target = $region5
  $region4: #{_forward.4} parent=0 // pred_region
    _
  $region5: #{_forward.4} parent=0 // pred_fallthru
    _
  // Predicated region
  $region6: #{_forward.4} parent=0 // pred_check
    _
  $region7: #{_forward.4} parent=0 // pred_check_branch
    %13 = sbr.rel (0) target = $region9
  $region8: #{_forward.4} parent=0 // pred_region
    _
  $region9: #{_forward.4} parent=0 // pred_fallthru
    _
  // Predicated region
  $region10: #{_forward.4} parent=0 // pred_check
    _
  $region11: #{_forward.4} parent=0 // pred_check_branch
    %15 = sbr.rel (0) target = $region13
  $region12: #{_forward.4} parent=0 // pred_region
    _
  $region13: #{_forward.4} parent=0 // pred_fallthru
    _
  // Predicated region
  $region14: #{_forward.4} parent=0 // pred_check
    _
  $region15: #{_forward.4} parent=0 // pred_check_branch
    %17 = sbr.rel (0) target = $region17
  $region16: #{_forward.4} parent=0 // pred_region
    _
  $region17: #{_forward.4} parent=0 // pred_fallthru
    _
  // Predicated region
  $region18: #{_forward.4} parent=0 // pred_check
    _
  $region19: #{_forward.4} parent=0 // pred_check_branch
    %19 = sbr.rel (0) target = $region21
  $region20: #{_forward.4} parent=0 // pred_region
    _
  $region21: #{_forward.4} parent=0 // pred_fallthru
    _
  %v21 = vld [vmem:[%s1] sm:$0xf]
  %v22 = vld [vmem:[%s1 + $0x4] sm:$0xf]
  %v23 = vld [vmem:[%s1 + $0x8] sm:$0xf]
  %v24 = vld [vmem:[%s1 + $0xc] sm:$0xf]
  %v25 = vld [vmem:[%s1 + $0x10] sm:$0xf]
  %v26 = vld [vmem:[%s1 + $0x14] sm:$0xf]
  %v27 = vld [vmem:[%s1 + $0x18] sm:$0xf]
  %v28 = vld [vmem:[%s1 + $0x1c] sm:$0xf]
  %v29 = vld [vmem:[%s1 + $0x20] sm:$0xf]
  %v30 = vld [vmem:[%s1 + $0x24] sm:$0xf]
  %v31 = vld [vmem:[%s1 + $0x28] sm:$0xf]
  %v32 = vld [vmem:[%s1 + $0x2c] sm:$0xf]
  %v33 = vld [vmem:[%s1 + $0x30] sm:$0xf]
  %v34 = vld [vmem:[%s1 + $0x34] sm:$0xf]
  %v35 = vld [vmem:[%s1 + $0x38] sm:$0xf]
  %v36 = vld [vmem:[%s1 + $0x3c] sm:$0xf]
  %v37 = vld [vmem:[%s0] sm:$0xff]
  %v38 = vld [vmem:[%s0 + $0x8] sm:$0xff]
  %v39 = vld [vmem:[%s0 + $0x10] sm:$0xff]
  %v40 = vld [vmem:[%s0 + $0x18] sm:$0xff]
  %v41 = vld [vmem:[%s0 + $0x20] sm:$0xff]
  %v42 = vld [vmem:[%s0 + $0x28] sm:$0xff]
  %v43 = vld [vmem:[%s0 + $0x30] sm:$0xff]
  %v44 = vld [vmem:[%s0 + $0x38] sm:$0xff]
  %v61 = vunpack.c.l.b16 %v21
  %v62 = vunpack.c.l.b16 %v22
  %v63 = vunpack.c.l.b16 %v23
  %v64 = vunpack.c.l.b16 %v24
  %v65 = vunpack.c.l.b16 %v25
  %v66 = vunpack.c.l.b16 %v26
  %v67 = vunpack.c.l.b16 %v27
  %v68 = vunpack.c.l.b16 %v28
  %v69 = vunpack.c.l.b16 %v29
  %v70 = vunpack.c.l.b16 %v30
  %v71 = vunpack.c.l.b16 %v31
  %v72 = vunpack.c.l.b16 %v32
  %v73 = vunpack.c.l.b16 %v33
  %v74 = vunpack.c.l.b16 %v34
  %v75 = vunpack.c.l.b16 %v35
  %v76 = vunpack.c.l.b16 %v36
  %v77 = vpack.c.b16 %v62, %v61
  %v78 = vpack.c.b16 %v64, %v63
  %v79 = vpack.c.b16 %v66, %v65
  %v80 = vpack.c.b16 %v68, %v67
  %v81 = vpack.c.b16 %v70, %v69
  %v82 = vpack.c.b16 %v72, %v71
  %v83 = vpack.c.b16 %v74, %v73
  %v84 = vpack.c.b16 %v76, %v75
  %v93 = vunpack.c.l.b16 %v37
  %v94 = vunpack.c.h.b16 %v37
  %v95 = vunpack.c.l.b16 %v38
  %v96 = vunpack.c.h.b16 %v38
  %v97 = vunpack.c.l.b16 %v39
  %v98 = vunpack.c.h.b16 %v39
  %v99 = vunpack.c.l.b16 %v40
  %v100 = vunpack.c.h.b16 %v40
  %v101 = vunpack.c.l.b16 %v41
  %v102 = vunpack.c.h.b16 %v41
  %v103 = vunpack.c.l.b16 %v42
  %v104 = vunpack.c.h.b16 %v42
  %v105 = vunpack.c.l.b16 %v43
  %v106 = vunpack.c.h.b16 %v43
  %v107 = vunpack.c.l.b16 %v44
  %v108 = vunpack.c.h.b16 %v44
  %v109 = vpack.c.b16 %v95, %v93
  %v110 = vpack.c.b16 %v96, %v94
  %v111 = vpack.c.b16 %v99, %v97
  %v112 = vpack.c.b16 %v100, %v98
  %v113 = vpack.c.b16 %v103, %v101
  %v114 = vpack.c.b16 %v104, %v102
  %v115 = vpack.c.b16 %v107, %v105
  %v116 = vpack.c.b16 %v108, %v106
  %vm125 = vcmask 523264
  %v127 = vsel %vm125, %v77, 0
  %v130 = vsel %vm125, %v78, 0
  %v133 = vsel %vm125, %v79, 0
  %v136 = vsel %vm125, %v80, 0
  %v139 = vsel %vm125, %v81, 0
  %v142 = vsel %vm125, %v82, 0
  %v145 = vsel %vm125, %v83, 0
  %v148 = vsel %vm125, %v84, 0
  %150 = vmatprep.subr.bf16.mxu0 0
  %151 = vmatpush1.bf16.msra.mxu0 0
  %152 = vmatprep.subr.bf16.mxu0 0
  %153 = vmatpush1.bf16.msra.mxu0 0
  %154 = vmatprep.subr.bf16.mxu0 0
  %155 = vmatpush1.bf16.msra.mxu0 0
  %156 = vmatprep.subr.bf16.mxu0 0
  %157 = vmatpush1.bf16.msra.mxu0 0
  %158 = vmatprep.subr.bf16.mxu0 %v116
  %159 = vmatpush1.bf16.msra.mxu0 %v115
  %160 = vmatprep.subr.bf16.mxu0 %v114
  %161 = vmatpush1.bf16.msra.mxu0 %v113
  %162 = vmatprep.subr.bf16.mxu0 %v112
  %163 = vmatpush1.bf16.msra.mxu0 %v111
  %164 = vmatprep.subr.bf16.mxu0 %v110
  %165 = vmatpush1.bf16.msra.mxu0 %v109
  %166 = vmatprep.subr.bf16.mxu0 0
  %167 = vmatpush2.bf16.msra.mxu0 0
  %168 = vmatprep.subr.bf16.mxu0 0
  %169 = vmatpush2.bf16.msra.mxu0 0
  %170 = vmatprep.subr.bf16.mxu0 0
  %171 = vmatpush2.bf16.msra.mxu0 0
  %172 = vmatprep.subr.bf16.mxu0 0
  %173 = vmatpush2.bf16.msra.mxu0 0
  %174 = vmatprep.subr.bf16.mxu0 0
  %175 = vmatpush2.bf16.msra.mxu0 0
  %176 = vmatprep.subr.bf16.mxu0 0
  %177 = vmatpush2.bf16.msra.mxu0 0
  %178 = vmatprep.subr.bf16.mxu0 0
  %179 = vmatpush2.bf16.msra.mxu0 0
  %180 = vmatprep.subr.bf16.mxu0 0
  %181 = vmatpush2.bf16.msra.mxu0 0
  %182 = vmatprep.mubr.bf16.mxu0 0
  %183 = vmatmul.mubr.bf16.gmra.mxu0 %v127
  %v184 = vpop.f32.mrf.mxu0
  %v185 = vadd.f32 0.0, %v184
  %v186 = vpop.f32.mrf.mxu0
  %v187 = vadd.f32 0.0, %v186
  %v188 = vpop.f32.mrf.mxu0
  %v189 = vadd.f32 0.0, %v188
  %v190 = vpop.f32.mrf.mxu0
  %v191 = vadd.f32 0.0, %v190
  %192 = vmatprep.mubr.bf16.mxu0 0
  %193 = vmatmul.mubr.bf16.gmra.mxu0 %v130
  %v194 = vpop.f32.mrf.mxu0
  %v195 = vadd.f32 0.0, %v194
  %v196 = vpop.f32.mrf.mxu0
  %v197 = vadd.f32 0.0, %v196
  %v198 = vpop.f32.mrf.mxu0
  %v199 = vadd.f32 0.0, %v198
  %v200 = vpop.f32.mrf.mxu0
  %v201 = vadd.f32 0.0, %v200
  %202 = vmatprep.mubr.bf16.mxu0 0
  %203 = vmatmul.mubr.bf16.gmra.mxu0 %v133
  %v204 = vpop.f32.mrf.mxu0
  %v205 = vadd.f32 0.0, %v204
  %v206 = vpop.f32.mrf.mxu0
  %v207 = vadd.f32 0.0, %v206
  %v208 = vpop.f32.mrf.mxu0
  %v209 = vadd.f32 0.0, %v208
  %v210 = vpop.f32.mrf.mxu0
  %v211 = vadd.f32 0.0, %v210
  %212 = vmatprep.mubr.bf16.mxu0 0
  %213 = vmatmul.mubr.bf16.gmra.mxu0 %v136
  %v214 = vpop.f32.mrf.mxu0
  %v215 = vadd.f32 0.0, %v214
  %v216 = vpop.f32.mrf.mxu0
  %v217 = vadd.f32 0.0, %v216
  %v218 = vpop.f32.mrf.mxu0
  %v219 = vadd.f32 0.0, %v218
  %v220 = vpop.f32.mrf.mxu0
  %v221 = vadd.f32 0.0, %v220
  %222 = vmatprep.mubr.bf16.mxu0 0
  %223 = vmatmul.mubr.bf16.gmra.mxu0 %v139
  %v224 = vpop.f32.mrf.mxu0
  %v225 = vadd.f32 0.0, %v224
  %v226 = vpop.f32.mrf.mxu0
  %v227 = vadd.f32 0.0, %v226
  %v228 = vpop.f32.mrf.mxu0
  %v229 = vadd.f32 0.0, %v228
  %v230 = vpop.f32.mrf.mxu0
  %v231 = vadd.f32 0.0, %v230
  %232 = vmatprep.mubr.bf16.mxu0 0
  %233 = vmatmul.mubr.bf16.gmra.mxu0 %v142
  %v234 = vpop.f32.mrf.mxu0
  %v235 = vadd.f32 0.0, %v234
  %v236 = vpop.f32.mrf.mxu0
  %v237 = vadd.f32 0.0, %v236
  %v238 = vpop.f32.mrf.mxu0
  %v239 = vadd.f32 0.0, %v238
  %v240 = vpop.f32.mrf.mxu0
  %v241 = vadd.f32 0.0, %v240
  %242 = vmatprep.mubr.bf16.mxu0 0
  %243 = vmatmul.mubr.bf16.gmra.mxu0 %v145
  %v244 = vpop.f32.mrf.mxu0
  %v245 = vadd.f32 0.0, %v244
  %v246 = vpop.f32.mrf.mxu0
  %v247 = vadd.f32 0.0, %v246
  %v248 = vpop.f32.mrf.mxu0
  %v249 = vadd.f32 0.0, %v248
  %v250 = vpop.f32.mrf.mxu0
  %v251 = vadd.f32 0.0, %v250
  %252 = vmatprep.mubr.bf16.mxu0 0
  %253 = vmatmul.mubr.bf16.gmra.mxu0 %v148
  %v254 = vpop.f32.mrf.mxu0
  %v255 = vadd.f32 0.0, %v254
  %v256 = vpop.f32.mrf.mxu0
  %v257 = vadd.f32 0.0, %v256
  %v258 = vpop.f32.mrf.mxu0
  %v259 = vadd.f32 0.0, %v258
  %v260 = vpop.f32.mrf.mxu0
  %v261 = vadd.f32 0.0, %v260
  %262 = vdwg.mxu0
  %271 = vrot.lane.b32.xlu0 %v205, 127
  %v272 = vpop.permute.xlu0 %271
  %273 = vrot.lane.b32.xlu0 %v207, 127
  %v274 = vpop.permute.xlu0 %273
  %275 = vrot.lane.b32.xlu0 %v209, 127
  %v276 = vpop.permute.xlu0 %275
  %277 = vrot.lane.b32.xlu0 %v211, 127
  %v278 = vpop.permute.xlu0 %277
  %279 = vrot.lane.b32.xlu0 %v215, 127
  %v280 = vpop.permute.xlu0 %279
  %281 = vrot.lane.b32.xlu0 %v217, 127
  %v282 = vpop.permute.xlu0 %281
  %283 = vrot.lane.b32.xlu0 %v219, 127
  %v284 = vpop.permute.xlu0 %283
  %285 = vrot.lane.b32.xlu0 %v221, 127
  %v286 = vpop.permute.xlu0 %285
  %vm287 = vcmask 1039360
  %v288 = vsel %vm287, %v272, %v274
  %v289 = vsel %vm287, %v276, %v278
  %v290 = vsel %vm287, %v280, %v282
  %v291 = vsel %vm287, %v284, %v286
  %v300 = vadd.f32 %v185, %v288
  %v301 = vadd.f32 %v187, %v274
  %v302 = vadd.f32 %v189, %v289
  %v303 = vadd.f32 %v191, %v278
  %v304 = vadd.f32 %v195, %v290
  %v305 = vadd.f32 %v197, %v282
  %v306 = vadd.f32 %v199, %v291
  %v307 = vadd.f32 %v201, %v286
  %316 = vrot.lane.b32.xlu0 %v225, 119
  %v317 = vpop.permute.xlu0 %316
  %318 = vrot.lane.b32.xlu0 %v227, 119
  %v319 = vpop.permute.xlu0 %318
  %320 = vrot.lane.b32.xlu0 %v229, 119
  %v321 = vpop.permute.xlu0 %320
  %322 = vrot.lane.b32.xlu0 %v231, 119
  %v323 = vpop.permute.xlu0 %322
  %324 = vrot.lane.b32.xlu0 %v235, 119
  %v325 = vpop.permute.xlu0 %324
  %326 = vrot.lane.b32.xlu0 %v237, 119
  %v327 = vpop.permute.xlu0 %326
  %328 = vrot.lane.b32.xlu0 %v239, 119
  %v329 = vpop.permute.xlu0 %328
  %330 = vrot.lane.b32.xlu0 %v241, 119
  %v331 = vpop.permute.xlu0 %330
  %vm332 = vcmask 973824
  %v333 = vsel %vm332, %v317, %v319
  %v334 = vsel %vm332, %v321, %v323
  %v335 = vsel %vm332, %v325, %v327
  %v336 = vsel %vm332, %v329, %v331
  %v345 = vadd.f32 %v300, %v333
  %v346 = vadd.f32 %v301, %v319
  %v347 = vadd.f32 %v302, %v334
  %v348 = vadd.f32 %v303, %v323
  %v349 = vadd.f32 %v304, %v335
  %v350 = vadd.f32 %v305, %v327
  %v351 = vadd.f32 %v306, %v336
  %v352 = vadd.f32 %v307, %v331
  %361 = vrot.lane.b32.xlu0 %v245, 118
  %v362 = vpop.permute.xlu0 %361
  %363 = vrot.lane.b32.xlu0 %v247, 118
  %v364 = vpop.permute.xlu0 %363
  %365 = vrot.lane.b32.xlu0 %v249, 118
  %v366 = vpop.permute.xlu0 %365
  %367 = vrot.lane.b32.xlu0 %v251, 118
  %v368 = vpop.permute.xlu0 %367
  %369 = vrot.lane.b32.xlu0 %v255, 118
  %v370 = vpop.permute.xlu0 %369
  %371 = vrot.lane.b32.xlu0 %v257, 118
  %v372 = vpop.permute.xlu0 %371
  %373 = vrot.lane.b32.xlu0 %v259, 118
  %v374 = vpop.permute.xlu0 %373
  %375 = vrot.lane.b32.xlu0 %v261, 118
  %v376 = vpop.permute.xlu0 %375
  %vm377 = vcmask 965632
  %v378 = vsel %vm377, %v362, %v364
  %v379 = vsel %vm377, %v366, %v368
  %v380 = vsel %vm377, %v370, %v372
  %v381 = vsel %vm377, %v374, %v376
  %v390 = vadd.f32 %v345, %v378
  %v391 = vadd.f32 %v346, %v364
  %v392 = vadd.f32 %v347, %v379
  %v393 = vadd.f32 %v348, %v368
  %v394 = vadd.f32 %v349, %v380
  %v395 = vadd.f32 %v350, %v372
  %v396 = vadd.f32 %v351, %v381
  %v397 = vadd.f32 %v352, %v376
  %v398 = vld [vmem:[%s4] sm:$0x3]
  %v400 = vlaneseq
  %v401 = vshrl.u32 %v400, 7
  %v402 = vsub.s32 0, %v401
  %v403 = vrot.slane %v398, %v402
  %v404 = vlaneseq
  %v405 = vshrl.u32 %v404, 7
  %v406 = vsub.s32 1, %v405
  %v407 = vrot.slane %v398, %v406
  %v410 = vmul.f32 %v390, %v403
  %v411 = vmul.f32 %v391, %v407
  %v412 = vmul.f32 %v392, %v403
  %v413 = vmul.f32 %v393, %v407
  %v414 = vmul.f32 %v394, %v403
  %v415 = vmul.f32 %v395, %v407
  %v416 = vmul.f32 %v396, %v403
  %v417 = vmul.f32 %v397, %v407
  %vm418 = vcmask 195584
  %v419 = vsel %vm418, %v411, 0.0
  %v420 = vadd.f32 %v410, %v419
  %421 = vadd.xlane.f32.xlu0 %v420
  %v422 = vpop.xlane.xlu0 %421
  %v423 = vsel %vm418, %v413, 0.0
  %v424 = vadd.f32 %v412, %v423
  %425 = vadd.xlane.f32.xlu0 %v424
  %v426 = vpop.xlane.xlu0 %425
  %v427 = vsel %vm418, %v415, 0.0
  %v428 = vadd.f32 %v414, %v427
  %429 = vadd.xlane.f32.xlu0 %v428
  %v430 = vpop.xlane.xlu0 %429
  %v431 = vsel %vm418, %v417, 0.0
  %v432 = vadd.f32 %v416, %v431
  %433 = vadd.xlane.f32.xlu0 %v432
  %v434 = vpop.xlane.xlu0 %433
  %v435 = vmul.f32 %v422, 0.0078125
  %v436 = vmul.f32 %v426, 0.0078125
  %v437 = vmul.f32 %v430, 0.0078125
  %v438 = vmul.f32 %v434, 0.0078125
  %v439 = vsub.f32 %v390, %v435
  %v440 = vsub.f32 %v391, %v435
  %v441 = vsub.f32 %v392, %v436
  %v442 = vsub.f32 %v393, %v436
  %v443 = vsub.f32 %v394, %v437
  %v444 = vsub.f32 %v395, %v437
  %v445 = vsub.f32 %v396, %v438
  %v446 = vsub.f32 %v397, %v438
  %v447 = vmul.f32 %v439, %v439
  %v448 = vmul.f32 %v440, %v440
  %v449 = vmul.f32 %v441, %v441
  %v450 = vmul.f32 %v442, %v442
  %v451 = vmul.f32 %v443, %v443
  %v452 = vmul.f32 %v444, %v444
  %v453 = vmul.f32 %v445, %v445
  %v454 = vmul.f32 %v446, %v446
  %v455 = vmul.f32 %v447, %v403
  %v456 = vmul.f32 %v448, %v407
  %v457 = vmul.f32 %v449, %v403
  %v458 = vmul.f32 %v450, %v407
  %v459 = vmul.f32 %v451, %v403
  %v460 = vmul.f32 %v452, %v407
  %v461 = vmul.f32 %v453, %v403
  %v462 = vmul.f32 %v454, %v407
  %v463 = vsel %vm418, %v456, 0.0
  %v464 = vadd.f32 %v455, %v463
  %465 = vadd.xlane.f32.xlu0 %v464
  %v466 = vpop.xlane.xlu0 %465
  %v467 = vsel %vm418, %v458, 0.0
  %v468 = vadd.f32 %v457, %v467
  %469 = vadd.xlane.f32.xlu0 %v468
  %v470 = vpop.xlane.xlu0 %469
  %v471 = vsel %vm418, %v460, 0.0
  %v472 = vadd.f32 %v459, %v471
  %473 = vadd.xlane.f32.xlu0 %v472
  %v474 = vpop.xlane.xlu0 %473
  %v475 = vsel %vm418, %v462, 0.0
  %v476 = vadd.f32 %v461, %v475
  %477 = vadd.xlane.f32.xlu0 %v476
  %v478 = vpop.xlane.xlu0 %477
  %v479 = vmul.f32 %v466, 0.0078125
  %v480 = vmul.f32 %v470, 0.0078125
  %v481 = vmul.f32 %v474, 0.0078125
  %v482 = vmul.f32 %v478, 0.0078125
  %v483 = vld [vmem:[%s2] sm:$0xff]
  %v484 = vld [vmem:[%s2 + $0x8] sm:$0xff]
  %v485 = vld [vmem:[%s2 + $0x10] sm:$0xff]
  %v486 = vld [vmem:[%s2 + $0x18] sm:$0xff]
  %v487 = vadd.f32 %v479, 1e-05
  %v488 = vadd.f32 %v480, 1e-05
  %v489 = vadd.f32 %v481, 1e-05
  %v490 = vadd.f32 %v482, 1e-05
  %v491 = vrsqrt.pop %v487
  %v492 = vrsqrt.pop %v488
  %v493 = vrsqrt.pop %v489
  %v494 = vrsqrt.pop %v490
  %v495 = vmul.f32 %v483, %v491
  %v496 = vmul.f32 %v484, %v492
  %v497 = vmul.f32 %v485, %v493
  %v498 = vmul.f32 %v486, %v494
  %500 = vset.pattern.permute.xlu0 0
  %501 = vperm.xlu0 %500, %v495
  %v502 = vpop.permute.xlu0 %501
  %505 = vset.pattern.permute.xlu0 0
  %506 = vperm.xlu0 %505, %v496
  %v507 = vpop.permute.xlu0 %506
  %510 = vset.pattern.permute.xlu0 0
  %511 = vperm.xlu0 %510, %v497
  %v512 = vpop.permute.xlu0 %511
  %515 = vset.pattern.permute.xlu0 0
  %516 = vperm.xlu0 %515, %v498
  %v517 = vpop.permute.xlu0 %516
  %v519 = vmul.f32 %v439, %v502
  %v520 = vmul.f32 %v440, %v502
  %v521 = vmul.f32 %v441, %v507
  %v522 = vmul.f32 %v442, %v507
  %v523 = vmul.f32 %v443, %v512
  %v524 = vmul.f32 %v444, %v512
  %v525 = vmul.f32 %v445, %v517
  %v526 = vmul.f32 %v446, %v517
  %v527 = vld [vmem:[%s3] sm:$0xff]
  %v528 = vld [vmem:[%s3 + $0x8] sm:$0xff]
  %v529 = vld [vmem:[%s3 + $0x10] sm:$0xff]
  %v530 = vld [vmem:[%s3 + $0x18] sm:$0xff]
  %532 = vset.pattern.permute.xlu0 0
  %533 = vperm.xlu0 %532, %v527
  %v534 = vpop.permute.xlu0 %533
  %537 = vset.pattern.permute.xlu0 0
  %538 = vperm.xlu0 %537, %v528
  %v539 = vpop.permute.xlu0 %538
  %542 = vset.pattern.permute.xlu0 0
  %543 = vperm.xlu0 %542, %v529
  %v544 = vpop.permute.xlu0 %543
  %547 = vset.pattern.permute.xlu0 0
  %548 = vperm.xlu0 %547, %v530
  %v549 = vpop.permute.xlu0 %548
  %v551 = vadd.f32 %v519, %v534
  %v552 = vadd.f32 %v520, %v534
  %v553 = vadd.f32 %v521, %v539
  %v554 = vadd.f32 %v522, %v539
  %v555 = vadd.f32 %v523, %v544
  %v556 = vadd.f32 %v524, %v544
  %v557 = vadd.f32 %v525, %v549
  %v558 = vadd.f32 %v526, %v549
  %v559 = vmul.f32 %v551, 0.2
  %v560 = vmul.f32 %v552, 0.2
  %v561 = vmul.f32 %v553, 0.2
  %v562 = vmul.f32 %v554, 0.2
  %v563 = vmul.f32 %v555, 0.2
  %v564 = vmul.f32 %v556, 0.2
  %v565 = vmul.f32 %v557, 0.2
  %v566 = vmul.f32 %v558, 0.2
  %v567 = vmax.f32 %v551, %v559
  %v568 = vmax.f32 %v552, %v560
  %v569 = vmax.f32 %v553, %v561
  %v570 = vmax.f32 %v554, %v562
  %v571 = vmax.f32 %v555, %v563
  %v572 = vmax.f32 %v556, %v564
  %v573 = vmax.f32 %v557, %v565
  %v574 = vmax.f32 %v558, %v566
  %575 = vst [vmem:[%s5] sm:$0xff] %v567
  %576 = vst.msk [vmem:[%s5 + $0x8] sm:$0xff] %vm418, %v568
  %577 = vst [vmem:[%s5 + $0x10] sm:$0xff] %v569
  %578 = vst.msk [vmem:[%s5 + $0x18] sm:$0xff] %vm418, %v570
  %579 = vst [vmem:[%s5 + $0x20] sm:$0xff] %v571
  %580 = vst.msk [vmem:[%s5 + $0x28] sm:$0xff] %vm418, %v572
  %581 = vst [vmem:[%s5 + $0x30] sm:$0xff] %v573
  %582 = vst.msk [vmem:[%s5 + $0x38] sm:$0xff] %vm418, %v574
  // Predicated region
  $region22: #{_forward.4} parent=0 // pred_check
    _
  $region23: #{_forward.4} parent=0 // pred_check_branch
    %584 = sbr.rel (0) target = $region25
  $region24: #{_forward.4} parent=0 // pred_region
    _
  $region25: #{_forward.4} parent=0 // pred_fallthru
    _
  // Predicated region
  $region26: #{_forward.4} parent=0 // pred_check
    _
  $region27: #{_forward.4} parent=0 // pred_check_branch
    %586 = sbr.rel (0) target = $region29
  $region28: #{_forward.4} parent=0 // pred_region
    _
  $region29: #{_forward.4} parent=0 // pred_fallthru
    _

// kernel: _forward.5
$region0: #{_forward.5}
  #allocation0 [shape = 'u32[]', space=smem, size = 0x4, offset = 0x4, fixed_abs, tag = 'smem constant byte address 0x4 - core index']
  #allocation1 [shape = 'u32[144,128]{1,0:T(1,128)}', space=vmem, size = 0x12000, scoped, tag = 'internal scratch']
  #allocation2 [shape = 'f32[1,1]{1,0:T(1,128)S(1)}', space=vmem, size = 0x200, scoped, tag = 'scoped memory for _forward.5']
  %s0 = inlined_call_operand.vmem [shape: bf16[128,50], index: 0, kind: input, shape index: {}]
  %s1 = inlined_call_operand.vmem [shape: bf16[256,128], index: 1, kind: input, shape index: {}]
  %s2 = inlined_call_operand.vmem [shape: f32[64,1], index: 2, kind: input, shape index: {}]
  %s3 = inlined_call_operand.vmem [shape: f32[64,1], index: 3, kind: input, shape index: {}]
  %s4 = inlined_call_operand.vmem [shape: f32[1,44], index: 4, kind: input, shape index: {}]
  %s5 = inlined_call_operand.vmem [shape: f32[2,64,44], index: 5, kind: input, shape index: {}]
  %s6 = inlined_call_operand.<no memory space> [shape: f32[1,1], index: 6, kind: input, shape index: {}]
  %s7 = inlined_call_operand.hbm [shape: f32[1,2], index: 7, kind: output, shape index: {}]
  %s8 = sld [smem:[#allocation0]]
  $region38: #{_forward.5} parent=0
    _
  %s10 = ssub.s32 1, %s8
  %s11 = scalar_select 0, %s10, %s8
  %v12 = vstv %s6
  %13 = vst [vmem:[#allocation2] sm:$0x1] %v12
  $region1: #{_forward.5} parent=0
    #allocation3 [shape = 'u8[512]{0}', space=vmem, size = 0x400, scoped, tag = 'output window, operand 0, single buffered']
    #allocation4 [shape = 's32[1]{0}', space=sflag, size = 0x4, scoped, tag = 'scoped memory for _forward.5']
    %14 = vsyncpa [#allocation4], 0
    // Predicated region
    $region2: #{_forward.5} parent=1 // pred_check
      _
    $region3: #{_forward.5} parent=1 // pred_check_branch
      %16 = sbr.rel (0) target = $region5
    $region4: #{_forward.5} parent=1 // pred_region
      _
    $region5: #{_forward.5} parent=1 // pred_fallthru
      _
    // Predicated region
    $region6: #{_forward.5} parent=1 // pred_check
      _
    $region7: #{_forward.5} parent=1 // pred_check_branch
      %18 = sbr.rel (0) target = $region9
    $region8: #{_forward.5} parent=1 // pred_region
      _
    $region9: #{_forward.5} parent=1 // pred_fallthru
      _
    // Predicated region
    $region10: #{_forward.5} parent=1 // pred_check
      _
    $region11: #{_forward.5} parent=1 // pred_check_branch
      %20 = sbr.rel (0) target = $region13
    $region12: #{_forward.5} parent=1 // pred_region
      _
    $region13: #{_forward.5} parent=1 // pred_fallthru
      _
    // Predicated region
    $region14: #{_forward.5} parent=1 // pred_check
      _
    $region15: #{_forward.5} parent=1 // pred_check_branch
      %22 = sbr.rel (0) target = $region17
    $region16: #{_forward.5} parent=1 // pred_region
      _
    $region17: #{_forward.5} parent=1 // pred_fallthru
      _
    // Predicated region
    $region18: #{_forward.5} parent=1 // pred_check
      _
    $region19: #{_forward.5} parent=1 // pred_check_branch
      %24 = sbr.rel (0) target = $region21
    $region20: #{_forward.5} parent=1 // pred_region
      _
    $region21: #{_forward.5} parent=1 // pred_fallthru
      _
    // Predicated region
    $region22: #{_forward.5} parent=1 // pred_check
      _
    $region23: #{_forward.5} parent=1 // pred_check_branch
      %26 = sbr.rel (0) target = $region25
    $region24: #{_forward.5} parent=1 // pred_region
      _
    $region25: #{_forward.5} parent=1 // pred_fallthru
      _
    // Predicated region
    $region26: #{_forward.5} parent=1 // pred_check
      _
    $region27: #{_forward.5} parent=1 // pred_check_branch
      %28 = sbr.rel (0) target = $region29
    $region28: #{_forward.5} parent=1 // pred_region
      _
    $region29: #{_forward.5} parent=1 // pred_fallthru
      _
    %v30 = vld [vmem:[%s1] sm:$0xf]
    %v31 = vld [vmem:[%s1 + $0x4] sm:$0xf]
    %v32 = vld [vmem:[%s1 + $0x8] sm:$0xf]
    %v33 = vld [vmem:[%s1 + $0xc] sm:$0xf]
    %v34 = vld [vmem:[%s1 + $0x10] sm:$0xf]
    %v35 = vld [vmem:[%s1 + $0x14] sm:$0xf]
    %v36 = vld [vmem:[%s1 + $0x18] sm:$0xf]
    %v37 = vld [vmem:[%s1 + $0x1c] sm:$0xf]
    %v38 = vld [vmem:[%s1 + $0x20] sm:$0xf]
    %v39 = vld [vmem:[%s1 + $0x24] sm:$0xf]
    %v40 = vld [vmem:[%s1 + $0x28] sm:$0xf]
    %v41 = vld [vmem:[%s1 + $0x2c] sm:$0xf]
    %v42 = vld [vmem:[%s1 + $0x30] sm:$0xf]
    %v43 = vld [vmem:[%s1 + $0x34] sm:$0xf]
    %v44 = vld [vmem:[%s1 + $0x38] sm:$0xf]
    %v45 = vld [vmem:[%s1 + $0x3c] sm:$0xf]
    %v46 = vld [vmem:[%s1 + $0x40] sm:$0xf]
    %v47 = vld [vmem:[%s1 + $0x44] sm:$0xf]
    %v48 = vld [vmem:[%s1 + $0x48] sm:$0xf]
    %v49 = vld [vmem:[%s1 + $0x4c] sm:$0xf]
    %v50 = vld [vmem:[%s1 + $0x50] sm:$0xf]
    %v51 = vld [vmem:[%s1 + $0x54] sm:$0xf]
    %v52 = vld [vmem:[%s1 + $0x58] sm:$0xf]
    %v53 = vld [vmem:[%s1 + $0x5c] sm:$0xf]
    %v54 = vld [vmem:[%s1 + $0x60] sm:$0xf]
    %v55 = vld [vmem:[%s1 + $0x64] sm:$0xf]
    %v56 = vld [vmem:[%s1 + $0x68] sm:$0xf]
    %v57 = vld [vmem:[%s1 + $0x6c] sm:$0xf]
    %v58 = vld [vmem:[%s1 + $0x70] sm:$0xf]
    %v59 = vld [vmem:[%s1 + $0x74] sm:$0xf]
    %v60 = vld [vmem:[%s1 + $0x78] sm:$0xf]
    %v61 = vld [vmem:[%s1 + $0x7c] sm:$0xf]
    %v62 = vld [vmem:[%s0] sm:$0xf]
    %v63 = vld [vmem:[%s0 + $0x4] sm:$0xf]
    %v64 = vld [vmem:[%s0 + $0x8] sm:$0xf]
    %v65 = vld [vmem:[%s0 + $0xc] sm:$0xf]
    %v66 = vld [vmem:[%s0 + $0x10] sm:$0xf]
    %v67 = vld [vmem:[%s0 + $0x14] sm:$0xf]
    %v68 = vld [vmem:[%s0 + $0x18] sm:$0xf]
    %v69 = vld [vmem:[%s0 + $0x1c] sm:$0xf]
    %v70 = vld [vmem:[%s0 + $0x20] sm:$0xf]
    %v71 = vld [vmem:[%s0 + $0x24] sm:$0xf]
    %v72 = vld [vmem:[%s0 + $0x28] sm:$0xf]
    %v73 = vld [vmem:[%s0 + $0x2c] sm:$0xf]
    %v74 = vld [vmem:[%s0 + $0x30] sm:$0xf]
    %v75 = vld [vmem:[%s0 + $0x34] sm:$0xf]
    %v76 = vld [vmem:[%s0 + $0x38] sm:$0xf]
    %v77 = vld [vmem:[%s0 + $0x3c] sm:$0xf]
    %v110 = vunpack.c.l.b16 %v30
    %v111 = vunpack.c.l.b16 %v31
    %v112 = vunpack.c.l.b16 %v32
    %v113 = vunpack.c.l.b16 %v33
    %v114 = vunpack.c.l.b16 %v34
    %v115 = vunpack.c.l.b16 %v35
    %v116 = vunpack.c.l.b16 %v36
    %v117 = vunpack.c.l.b16 %v37
    %v118 = vunpack.c.l.b16 %v38
    %v119 = vunpack.c.l.b16 %v39
    %v120 = vunpack.c.l.b16 %v40
    %v121 = vunpack.c.l.b16 %v41
    %v122 = vunpack.c.l.b16 %v42
    %v123 = vunpack.c.l.b16 %v43
    %v124 = vunpack.c.l.b16 %v44
    %v125 = vunpack.c.l.b16 %v45
    %v126 = vunpack.c.l.b16 %v46
    %v127 = vunpack.c.l.b16 %v47
    %v128 = vunpack.c.l.b16 %v48
    %v129 = vunpack.c.l.b16 %v49
    %v130 = vunpack.c.l.b16 %v50
    %v131 = vunpack.c.l.b16 %v51
    %v132 = vunpack.c.l.b16 %v52
    %v133 = vunpack.c.l.b16 %v53
    %v134 = vunpack.c.l.b16 %v54
    %v135 = vunpack.c.l.b16 %v55
    %v136 = vunpack.c.l.b16 %v56
    %v137 = vunpack.c.l.b16 %v57
    %v138 = vunpack.c.l.b16 %v58
    %v139 = vunpack.c.l.b16 %v59
    %v140 = vunpack.c.l.b16 %v60
    %v141 = vunpack.c.l.b16 %v61
    %v142 = vpack.c.b16 %v111, %v110
    %v143 = vpack.c.b16 %v113, %v112
    %v144 = vpack.c.b16 %v115, %v114
    %v145 = vpack.c.b16 %v117, %v116
    %v146 = vpack.c.b16 %v119, %v118
    %v147 = vpack.c.b16 %v121, %v120
    %v148 = vpack.c.b16 %v123, %v122
    %v149 = vpack.c.b16 %v125, %v124
    %v150 = vpack.c.b16 %v127, %v126
    %v151 = vpack.c.b16 %v129, %v128
    %v152 = vpack.c.b16 %v131, %v130
    %v153 = vpack.c.b16 %v133, %v132
    %v154 = vpack.c.b16 %v135, %v134
    %v155 = vpack.c.b16 %v137, %v136
    %v156 = vpack.c.b16 %v139, %v138
    %v157 = vpack.c.b16 %v141, %v140
    %v190 = vunpack.c.l.b16 %v62
    %v191 = vunpack.c.l.b16 %v63
    %v192 = vunpack.c.l.b16 %v64
    %v193 = vunpack.c.l.b16 %v65
    %v194 = vunpack.c.l.b16 %v66
    %v195 = vunpack.c.l.b16 %v67
    %v196 = vunpack.c.l.b16 %v68
    %v197 = vunpack.c.l.b16 %v69
    %v198 = vunpack.c.l.b16 %v70
    %v199 = vunpack.c.l.b16 %v71
    %v200 = vunpack.c.l.b16 %v72
    %v201 = vunpack.c.l.b16 %v73
    %v202 = vunpack.c.l.b16 %v74
    %v203 = vunpack.c.l.b16 %v75
    %v204 = vunpack.c.l.b16 %v76
    %v205 = vunpack.c.l.b16 %v77
    %v206 = vpack.c.b16 %v191, %v190
    %v207 = vpack.c.b16 %v193, %v192
    %v208 = vpack.c.b16 %v195, %v194
    %v209 = vpack.c.b16 %v197, %v196
    %v210 = vpack.c.b16 %v199, %v198
    %v211 = vpack.c.b16 %v201, %v200
    %v212 = vpack.c.b16 %v203, %v202
    %v213 = vpack.c.b16 %v205, %v204
    %222 = vmatprep.subr.bf16.mxu0 0
    %223 = vmatpush1.bf16.msra.mxu0 %v213
    %224 = vmatprep.subr.bf16.mxu0 0
    %225 = vmatpush1.bf16.msra.mxu0 %v212
    %226 = vmatprep.subr.bf16.mxu0 0
    %227 = vmatpush1.bf16.msra.mxu0 %v211
    %228 = vmatprep.subr.bf16.mxu0 0
    %229 = vmatpush1.bf16.msra.mxu0 %v210
    %230 = vmatprep.subr.bf16.mxu0 0
    %231 = vmatpush1.bf16.msra.mxu0 %v209
    %232 = vmatprep.subr.bf16.mxu0 0
    %233 = vmatpush1.bf16.msra.mxu0 %v208
    %234 = vmatprep.subr.bf16.mxu0 0
    %235 = vmatpush1.bf16.msra.mxu0 %v207
    %236 = vmatprep.subr.bf16.mxu0 0
    %237 = vmatpush1.bf16.msra.mxu0 %v206
    %238 = vmatprep.subr.bf16.mxu0 0
    %239 = vmatpush2.bf16.msra.mxu0 0
    %240 = vmatprep.subr.bf16.mxu0 0
    %241 = vmatpush2.bf16.msra.mxu0 0
    %242 = vmatprep.subr.bf16.mxu0 0
    %243 = vmatpush2.bf16.msra.mxu0 0
    %244 = vmatprep.subr.bf16.mxu0 0
    %245 = vmatpush2.bf16.msra.mxu0 0
    %246 = vmatprep.subr.bf16.mxu0 0
    %247 = vmatpush2.bf16.msra.mxu0 0
    %248 = vmatprep.subr.bf16.mxu0 0
    %249 = vmatpush2.bf16.msra.mxu0 0
    %250 = vmatprep.subr.bf16.mxu0 0
    %251 = vmatpush2.bf16.msra.mxu0 0
    %252 = vmatprep.subr.bf16.mxu0 0
    %253 = vmatpush2.bf16.msra.mxu0 0
    %254 = vmatprep.mubr.bf16.mxu0 0
    %255 = vmatmul.mubr.bf16.gmra.mxu0 %v142
    %v256 = vpop.f32.mrf.mxu0
    %v257 = vadd.f32 0.0, %v256
    %v258 = vpop.f32.mrf.mxu0
    %v259 = vpop.f32.mrf.mxu0
    %v260 = vadd.f32 0.0, %v259
    %v261 = vpop.f32.mrf.mxu0
    %262 = vmatprep.mubr.bf16.mxu0 0
    %263 = vmatmul.mubr.bf16.gmra.mxu0 %v143
    %v264 = vpop.f32.mrf.mxu0
    %v265 = vadd.f32 0.0, %v264
    %v266 = vpop.f32.mrf.mxu0
    %v267 = vpop.f32.mrf.mxu0
    %v268 = vadd.f32 0.0, %v267
    %v269 = vpop.f32.mrf.mxu0
    %270 = vmatprep.mubr.bf16.mxu0 0
    %271 = vmatmul.mubr.bf16.gmra.mxu0 %v144
    %v272 = vpop.f32.mrf.mxu0
    %v273 = vadd.f32 0.0, %v272
    %v274 = vpop.f32.mrf.mxu0
    %v275 = vpop.f32.mrf.mxu0
    %v276 = vadd.f32 0.0, %v275
    %v277 = vpop.f32.mrf.mxu0
    %278 = vmatprep.mubr.bf16.mxu0 0
    %279 = vmatmul.mubr.bf16.gmra.mxu0 %v145
    %v280 = vpop.f32.mrf.mxu0
    %v281 = vadd.f32 0.0, %v280
    %v282 = vpop.f32.mrf.mxu0
    %v283 = vpop.f32.mrf.mxu0
    %v284 = vadd.f32 0.0, %v283
    %v285 = vpop.f32.mrf.mxu0
    %286 = vmatprep.mubr.bf16.mxu0 0
    %287 = vmatmul.mubr.bf16.gmra.mxu0 %v146
    %v288 = vpop.f32.mrf.mxu0
    %v289 = vadd.f32 0.0, %v288
    %v290 = vpop.f32.mrf.mxu0
    %v291 = vpop.f32.mrf.mxu0
    %v292 = vadd.f32 0.0, %v291
    %v293 = vpop.f32.mrf.mxu0
    %294 = vmatprep.mubr.bf16.mxu0 0
    %295 = vmatmul.mubr.bf16.gmra.mxu0 %v147
    %v296 = vpop.f32.mrf.mxu0
    %v297 = vadd.f32 0.0, %v296
    %v298 = vpop.f32.mrf.mxu0
    %v299 = vpop.f32.mrf.mxu0
    %v300 = vadd.f32 0.0, %v299
    %v301 = vpop.f32.mrf.mxu0
    %302 = vmatprep.mubr.bf16.mxu0 0
    %303 = vmatmul.mubr.bf16.gmra.mxu0 %v148
    %v304 = vpop.f32.mrf.mxu0
    %v305 = vadd.f32 0.0, %v304
    %v306 = vpop.f32.mrf.mxu0
    %v307 = vpop.f32.mrf.mxu0
    %v308 = vadd.f32 0.0, %v307
    %v309 = vpop.f32.mrf.mxu0
    %310 = vmatprep.mubr.bf16.mxu0 0
    %311 = vmatmul.mubr.bf16.gmra.mxu0 %v149
    %v312 = vpop.f32.mrf.mxu0
    %v313 = vadd.f32 0.0, %v312
    %v314 = vpop.f32.mrf.mxu0
    %v315 = vpop.f32.mrf.mxu0
    %v316 = vadd.f32 0.0, %v315
    %v317 = vpop.f32.mrf.mxu0
    %318 = vmatprep.mubr.bf16.mxu0 0
    %319 = vmatmul.mubr.bf16.gmra.mxu0 %v150
    %v320 = vpop.f32.mrf.mxu0
    %v321 = vadd.f32 0.0, %v320
    %v322 = vpop.f32.mrf.mxu0
    %v323 = vpop.f32.mrf.mxu0
    %v324 = vadd.f32 0.0, %v323
    %v325 = vpop.f32.mrf.mxu0
    %326 = vmatprep.mubr.bf16.mxu0 0
    %327 = vmatmul.mubr.bf16.gmra.mxu0 %v151
    %v328 = vpop.f32.mrf.mxu0
    %v329 = vadd.f32 0.0, %v328
    %v330 = vpop.f32.mrf.mxu0
    %v331 = vpop.f32.mrf.mxu0
    %v332 = vadd.f32 0.0, %v331
    %v333 = vpop.f32.mrf.mxu0
    %334 = vmatprep.mubr.bf16.mxu0 0
    %335 = vmatmul.mubr.bf16.gmra.mxu0 %v152
    %v336 = vpop.f32.mrf.mxu0
    %v337 = vadd.f32 0.0, %v336
    %v338 = vpop.f32.mrf.mxu0
    %v339 = vpop.f32.mrf.mxu0
    %v340 = vadd.f32 0.0, %v339
    %v341 = vpop.f32.mrf.mxu0
    %342 = vmatprep.mubr.bf16.mxu0 0
    %343 = vmatmul.mubr.bf16.gmra.mxu0 %v153
    %v344 = vpop.f32.mrf.mxu0
    %v345 = vadd.f32 0.0, %v344
    %v346 = vpop.f32.mrf.mxu0
    %v347 = vpop.f32.mrf.mxu0
    %v348 = vadd.f32 0.0, %v347
    %v349 = vpop.f32.mrf.mxu0
    %350 = vmatprep.mubr.bf16.mxu0 0
    %351 = vmatmul.mubr.bf16.gmra.mxu0 %v154
    %v352 = vpop.f32.mrf.mxu0
    %v353 = vadd.f32 0.0, %v352
    %v354 = vpop.f32.mrf.mxu0
    %v355 = vpop.f32.mrf.mxu0
    %v356 = vadd.f32 0.0, %v355
    %v357 = vpop.f32.mrf.mxu0
    %358 = vmatprep.mubr.bf16.mxu0 0
    %359 = vmatmul.mubr.bf16.gmra.mxu0 %v155
    %v360 = vpop.f32.mrf.mxu0
    %v361 = vadd.f32 0.0, %v360
    %v362 = vpop.f32.mrf.mxu0
    %v363 = vpop.f32.mrf.mxu0
    %v364 = vadd.f32 0.0, %v363
    %v365 = vpop.f32.mrf.mxu0
    %366 = vmatprep.mubr.bf16.mxu0 0
    %367 = vmatmul.mubr.bf16.gmra.mxu0 %v156
    %v368 = vpop.f32.mrf.mxu0
    %v369 = vadd.f32 0.0, %v368
    %v370 = vpop.f32.mrf.mxu0
    %v371 = vpop.f32.mrf.mxu0
    %v372 = vadd.f32 0.0, %v371
    %v373 = vpop.f32.mrf.mxu0
    %374 = vmatprep.mubr.bf16.mxu0 0
    %375 = vmatmul.mubr.bf16.gmra.mxu0 %v157
    %v376 = vpop.f32.mrf.mxu0
    %v377 = vadd.f32 0.0, %v376
    %v378 = vpop.f32.mrf.mxu0
    %v379 = vpop.f32.mrf.mxu0
    %v380 = vadd.f32 0.0, %v379
    %v381 = vpop.f32.mrf.mxu0
    %382 = vdwg.mxu0
    %391 = vrot.lane.b32.xlu0 %v289, 127
    %v392 = vpop.permute.xlu0 %391
    %393 = vrot.lane.b32.xlu0 %v292, 127
    %v394 = vpop.permute.xlu0 %393
    %395 = vrot.lane.b32.xlu0 %v297, 127
    %v396 = vpop.permute.xlu0 %395
    %397 = vrot.lane.b32.xlu0 %v300, 127
    %v398 = vpop.permute.xlu0 %397
    %399 = vrot.lane.b32.xlu0 %v305, 127
    %v400 = vpop.permute.xlu0 %399
    %401 = vrot.lane.b32.xlu0 %v308, 127
    %v402 = vpop.permute.xlu0 %401
    %403 = vrot.lane.b32.xlu0 %v313, 127
    %v404 = vpop.permute.xlu0 %403
    %405 = vrot.lane.b32.xlu0 %v316, 127
    %v406 = vpop.permute.xlu0 %405
    %v415 = vadd.f32 %v257, %v392
    %v416 = vadd.f32 %v260, %v394
    %v417 = vadd.f32 %v265, %v396
    %v418 = vadd.f32 %v268, %v398
    %v419 = vadd.f32 %v273, %v400
    %v420 = vadd.f32 %v276, %v402
    %v421 = vadd.f32 %v281, %v404
    %v422 = vadd.f32 %v284, %v406
    %431 = vrot.lane.b32.xlu0 %v321, 123
    %v432 = vpop.permute.xlu0 %431
    %433 = vrot.lane.b32.xlu0 %v324, 123
    %v434 = vpop.permute.xlu0 %433
    %435 = vrot.lane.b32.xlu0 %v329, 123
    %v436 = vpop.permute.xlu0 %435
    %437 = vrot.lane.b32.xlu0 %v332, 123
    %v438 = vpop.permute.xlu0 %437
    %439 = vrot.lane.b32.xlu0 %v337, 123
    %v440 = vpop.permute.xlu0 %439
    %441 = vrot.lane.b32.xlu0 %v340, 123
    %v442 = vpop.permute.xlu0 %441
    %443 = vrot.lane.b32.xlu0 %v345, 123
    %v444 = vpop.permute.xlu0 %443
    %445 = vrot.lane.b32.xlu0 %v348, 123
    %v446 = vpop.permute.xlu0 %445
    %v455 = vadd.f32 %v415, %v432
    %v456 = vadd.f32 %v416, %v434
    %v457 = vadd.f32 %v417, %v436
    %v458 = vadd.f32 %v418, %v438
    %v459 = vadd.f32 %v419, %v440
    %v460 = vadd.f32 %v420, %v442
    %v461 = vadd.f32 %v421, %v444
    %v462 = vadd.f32 %v422, %v446
    %471 = vrot.lane.b32.xlu0 %v353, 122
    %v472 = vpop.permute.xlu0 %471
    %473 = vrot.lane.b32.xlu0 %v356, 122
    %v474 = vpop.permute.xlu0 %473
    %475 = vrot.lane.b32.xlu0 %v361, 122
    %v476 = vpop.permute.xlu0 %475
    %477 = vrot.lane.b32.xlu0 %v364, 122
    %v478 = vpop.permute.xlu0 %477
    %479 = vrot.lane.b32.xlu0 %v369, 122
    %v480 = vpop.permute.xlu0 %479
    %481 = vrot.lane.b32.xlu0 %v372, 122
    %v482 = vpop.permute.xlu0 %481
    %483 = vrot.lane.b32.xlu0 %v377, 122
    %v484 = vpop.permute.xlu0 %483
    %485 = vrot.lane.b32.xlu0 %v380, 122
    %v486 = vpop.permute.xlu0 %485
    %v495 = vadd.f32 %v455, %v472
    %v496 = vadd.f32 %v456, %v474
    %v497 = vadd.f32 %v457, %v476
    %v498 = vadd.f32 %v458, %v478
    %v499 = vadd.f32 %v459, %v480
    %v500 = vadd.f32 %v460, %v482
    %v501 = vadd.f32 %v461, %v484
    %v502 = vadd.f32 %v462, %v486
    %v503 = vld [vmem:[%s4] sm:$0x1]
    %v505 = vlaneseq
    %v506 = vshrl.u32 %v505, 7
    %v507 = vsub.s32 0, %v506
    %v508 = vrot.slane %v503, %v507
    %v510 = vmul.f32 %v495, %v508
    %v511 = vmul.f32 %v496, %v508
    %v512 = vmul.f32 %v497, %v508
    %v513 = vmul.f32 %v498, %v508
    %v514 = vmul.f32 %v499, %v508
    %v515 = vmul.f32 %v500, %v508
    %v516 = vmul.f32 %v501, %v508
    %v517 = vmul.f32 %v502, %v508
    %vm518 = vcmask 359424
    %v519 = vsel %vm518, %v510, 0.0
    %520 = vadd.xlane.f32.xlu0 %v519
    %v521 = vpop.xlane.xlu0 %520
    %v522 = vsel %vm518, %v511, 0.0
    %523 = vadd.xlane.f32.xlu0 %v522
    %v524 = vpop.xlane.xlu0 %523
    %v525 = vsel %vm518, %v512, 0.0
    %526 = vadd.xlane.f32.xlu0 %v525
    %v527 = vpop.xlane.xlu0 %526
    %v528 = vsel %vm518, %v513, 0.0
    %529 = vadd.xlane.f32.xlu0 %v528
    %v530 = vpop.xlane.xlu0 %529
    %v531 = vsel %vm518, %v514, 0.0
    %532 = vadd.xlane.f32.xlu0 %v531
    %v533 = vpop.xlane.xlu0 %532
    %v534 = vsel %vm518, %v515, 0.0
    %535 = vadd.xlane.f32.xlu0 %v534
    %v536 = vpop.xlane.xlu0 %535
    %v537 = vsel %vm518, %v516, 0.0
    %538 = vadd.xlane.f32.xlu0 %v537
    %v539 = vpop.xlane.xlu0 %538
    %v540 = vsel %vm518, %v517, 0.0
    %541 = vadd.xlane.f32.xlu0 %v540
    %v542 = vpop.xlane.xlu0 %541
    %v543 = vmul.f32 %v521, 0.03125
    %v544 = vmul.f32 %v524, 0.03125
    %v545 = vmul.f32 %v527, 0.03125
    %v546 = vmul.f32 %v530, 0.03125
    %v547 = vmul.f32 %v533, 0.03125
    %v548 = vmul.f32 %v536, 0.03125
    %v549 = vmul.f32 %v539, 0.03125
    %v550 = vmul.f32 %v542, 0.03125
    %v551 = vsub.f32 %v495, %v543
    %v552 = vsub.f32 %v496, %v544
    %v553 = vsub.f32 %v497, %v545
    %v554 = vsub.f32 %v498, %v546
    %v555 = vsub.f32 %v499, %v547
    %v556 = vsub.f32 %v500, %v548
    %v557 = vsub.f32 %v501, %v549
    %v558 = vsub.f32 %v502, %v550
    %v559 = vmul.f32 %v551, %v551
    %v560 = vmul.f32 %v552, %v552
    %v561 = vmul.f32 %v553, %v553
    %v562 = vmul.f32 %v554, %v554
    %v563 = vmul.f32 %v555, %v555
    %v564 = vmul.f32 %v556, %v556
    %v565 = vmul.f32 %v557, %v557
    %v566 = vmul.f32 %v558, %v558
    %v567 = vmul.f32 %v559, %v508
    %v568 = vmul.f32 %v560, %v508
    %v569 = vmul.f32 %v561, %v508
    %v570 = vmul.f32 %v562, %v508
    %v571 = vmul.f32 %v563, %v508
    %v572 = vmul.f32 %v564, %v508
    %v573 = vmul.f32 %v565, %v508
    %v574 = vmul.f32 %v566, %v508
    %v575 = vsel %vm518, %v567, 0.0
    %576 = vadd.xlane.f32.xlu0 %v575
    %v577 = vpop.xlane.xlu0 %576
    %v578 = vsel %vm518, %v568, 0.0
    %579 = vadd.xlane.f32.xlu0 %v578
    %v580 = vpop.xlane.xlu0 %579
    %v581 = vsel %vm518, %v569, 0.0
    %582 = vadd.xlane.f32.xlu0 %v581
    %v583 = vpop.xlane.xlu0 %582
    %v584 = vsel %vm518, %v570, 0.0
    %585 = vadd.xlane.f32.xlu0 %v584
    %v586 = vpop.xlane.xlu0 %585
    %v587 = vsel %vm518, %v571, 0.0
    %588 = vadd.xlane.f32.xlu0 %v587
    %v589 = vpop.xlane.xlu0 %588
    %v590 = vsel %vm518, %v572, 0.0
    %591 = vadd.xlane.f32.xlu0 %v590
    %v592 = vpop.xlane.xlu0 %591
    %v593 = vsel %vm518, %v573, 0.0
    %594 = vadd.xlane.f32.xlu0 %v593
    %v595 = vpop.xlane.xlu0 %594
    %v596 = vsel %vm518, %v574, 0.0
    %597 = vadd.xlane.f32.xlu0 %v596
    %v598 = vpop.xlane.xlu0 %597
    %v599 = vmul.f32 %v577, 0.03125
    %v600 = vmul.f32 %v580, 0.03125
    %v601 = vmul.f32 %v583, 0.03125
    %v602 = vmul.f32 %v586, 0.03125
    %v603 = vmul.f32 %v589, 0.03125
    %v604 = vmul.f32 %v592, 0.03125
    %v605 = vmul.f32 %v595, 0.03125
    %v606 = vmul.f32 %v598, 0.03125
    %v607 = vld [vmem:[%s2] sm:$0xff]
    %v608 = vld [vmem:[%s2 + $0x8] sm:$0xff]
    %v609 = vld [vmem:[%s2 + $0x10] sm:$0xff]
    %v610 = vld [vmem:[%s2 + $0x18] sm:$0xff]
    %v611 = vld [vmem:[%s2 + $0x20] sm:$0xff]
    %v612 = vld [vmem:[%s2 + $0x28] sm:$0xff]
    %v613 = vld [vmem:[%s2 + $0x30] sm:$0xff]
    %v614 = vld [vmem:[%s2 + $0x38] sm:$0xff]
    %v615 = vadd.f32 %v599, 1e-05
    %v616 = vadd.f32 %v600, 1e-05
    %v617 = vadd.f32 %v601, 1e-05
    %v618 = vadd.f32 %v602, 1e-05
    %v619 = vadd.f32 %v603, 1e-05
    %v620 = vadd.f32 %v604, 1e-05
    %v621 = vadd.f32 %v605, 1e-05
    %v622 = vadd.f32 %v606, 1e-05
    %v623 = vrsqrt.pop %v615
    %v624 = vrsqrt.pop %v616
    %v625 = vrsqrt.pop %v617
    %v626 = vrsqrt.pop %v618
    %v627 = vrsqrt.pop %v619
    %v628 = vrsqrt.pop %v620
    %v629 = vrsqrt.pop %v621
    %v630 = vrsqrt.pop %v622
    %v631 = vmul.f32 %v607, %v623
    %v632 = vmul.f32 %v608, %v624
    %v633 = vmul.f32 %v609, %v625
    %v634 = vmul.f32 %v610, %v626
    %v635 = vmul.f32 %v611, %v627
    %v636 = vmul.f32 %v612, %v628
    %v637 = vmul.f32 %v613, %v629
    %v638 = vmul.f32 %v614, %v630
    %640 = vset.pattern.permute.xlu0 0
    %641 = vperm.xlu0 %640, %v631
    %v642 = vpop.permute.xlu0 %641
    %645 = vset.pattern.permute.xlu0 0
    %646 = vperm.xlu0 %645, %v632
    %v647 = vpop.permute.xlu0 %646
    %650 = vset.pattern.permute.xlu0 0
    %651 = vperm.xlu0 %650, %v633
    %v652 = vpop.permute.xlu0 %651
    %655 = vset.pattern.permute.xlu0 0
    %656 = vperm.xlu0 %655, %v634
    %v657 = vpop.permute.xlu0 %656
    %660 = vset.pattern.permute.xlu0 0
    %661 = vperm.xlu0 %660, %v635
    %v662 = vpop.permute.xlu0 %661
    %665 = vset.pattern.permute.xlu0 0
    %666 = vperm.xlu0 %665, %v636
    %v667 = vpop.permute.xlu0 %666
    %670 = vset.pattern.permute.xlu0 0
    %671 = vperm.xlu0 %670, %v637
    %v672 = vpop.permute.xlu0 %671
    %675 = vset.pattern.permute.xlu0 0
    %676 = vperm.xlu0 %675, %v638
    %v677 = vpop.permute.xlu0 %676
    %v679 = vmul.f32 %v551, %v642
    %v680 = vmul.f32 %v552, %v647
    %v681 = vmul.f32 %v553, %v652
    %v682 = vmul.f32 %v554, %v657
    %v683 = vmul.f32 %v555, %v662
    %v684 = vmul.f32 %v556, %v667
    %v685 = vmul.f32 %v557, %v672
    %v686 = vmul.f32 %v558, %v677
    %v687 = vld [vmem:[%s3] sm:$0xff]
    %v688 = vld [vmem:[%s3 + $0x8] sm:$0xff]
    %v689 = vld [vmem:[%s3 + $0x10] sm:$0xff]
    %v690 = vld [vmem:[%s3 + $0x18] sm:$0xff]
    %v691 = vld [vmem:[%s3 + $0x20] sm:$0xff]
    %v692 = vld [vmem:[%s3 + $0x28] sm:$0xff]
    %v693 = vld [vmem:[%s3 + $0x30] sm:$0xff]
    %v694 = vld [vmem:[%s3 + $0x38] sm:$0xff]
    %696 = vset.pattern.permute.xlu0 0
    %697 = vperm.xlu0 %696, %v687
    %v698 = vpop.permute.xlu0 %697
    %701 = vset.pattern.permute.xlu0 0
    %702 = vperm.xlu0 %701, %v688
    %v703 = vpop.permute.xlu0 %702
    %706 = vset.pattern.permute.xlu0 0
    %707 = vperm.xlu0 %706, %v689
    %v708 = vpop.permute.xlu0 %707
    %711 = vset.pattern.permute.xlu0 0
    %712 = vperm.xlu0 %711, %v690
    %v713 = vpop.permute.xlu0 %712
    %716 = vset.pattern.permute.xlu0 0
    %717 = vperm.xlu0 %716, %v691
    %v718 = vpop.permute.xlu0 %717
    %721 = vset.pattern.permute.xlu0 0
    %722 = vperm.xlu0 %721, %v692
    %v723 = vpop.permute.xlu0 %722
    %726 = vset.pattern.permute.xlu0 0
    %727 = vperm.xlu0 %726, %v693
    %v728 = vpop.permute.xlu0 %727
    %731 = vset.pattern.permute.xlu0 0
    %732 = vperm.xlu0 %731, %v694
    %v733 = vpop.permute.xlu0 %732
    %v735 = vadd.f32 %v679, %v698
    %v736 = vadd.f32 %v680, %v703
    %v737 = vadd.f32 %v681, %v708
    %v738 = vadd.f32 %v682, %v713
    %v739 = vadd.f32 %v683, %v718
    %v740 = vadd.f32 %v684, %v723
    %v741 = vadd.f32 %v685, %v728
    %v742 = vadd.f32 %v686, %v733
    %v743 = vmul.f32 %v735, 0.2
    %v744 = vmul.f32 %v736, 0.2
    %v745 = vmul.f32 %v737, 0.2
    %v746 = vmul.f32 %v738, 0.2
    %v747 = vmul.f32 %v739, 0.2
    %v748 = vmul.f32 %v740, 0.2
    %v749 = vmul.f32 %v741, 0.2
    %v750 = vmul.f32 %v742, 0.2
    %v751 = vmax.f32 %v735, %v743
    %v752 = vmax.f32 %v736, %v744
    %v753 = vmax.f32 %v737, %v745
    %v754 = vmax.f32 %v738, %v746
    %v755 = vmax.f32 %v739, %v747
    %v756 = vmax.f32 %v740, %v748
    %v757 = vmax.f32 %v741, %v749
    %v758 = vmax.f32 %v742, %v750
    %v759 = vld [vmem:[%s5] sm:$0xff]
    %v760 = vld [vmem:[%s5 + $0x8] sm:$0xff]
    %v761 = vld [vmem:[%s5 + $0x10] sm:$0xff]
    %v762 = vld [vmem:[%s5 + $0x18] sm:$0xff]
    %v763 = vld [vmem:[%s5 + $0x20] sm:$0xff]
    %v764 = vld [vmem:[%s5 + $0x28] sm:$0xff]
    %v765 = vld [vmem:[%s5 + $0x30] sm:$0xff]
    %v766 = vld [vmem:[%s5 + $0x38] sm:$0xff]
    %v767 = vmul.f32 %v751, %v759
    %v768 = vmul.f32 %v752, %v760
    %v769 = vmul.f32 %v753, %v761
    %v770 = vmul.f32 %v754, %v762
    %v771 = vmul.f32 %v755, %v763
    %v772 = vmul.f32 %v756, %v764
    %v773 = vmul.f32 %v757, %v765
    %v774 = vmul.f32 %v758, %v766
    %v775 = vsel %vm518, %v767, 0.0
    %776 = vadd.xlane.f32.xlu0 %v775
    %v777 = vpop.xlane.xlu0 %776
    %v778 = vsel %vm518, %v768, 0.0
    %779 = vadd.xlane.f32.xlu0 %v778
    %v780 = vpop.xlane.xlu0 %779
    %v781 = vsel %vm518, %v769, 0.0
    %782 = vadd.xlane.f32.xlu0 %v781
    %v783 = vpop.xlane.xlu0 %782
    %v784 = vsel %vm518, %v770, 0.0
    %785 = vadd.xlane.f32.xlu0 %v784
    %v786 = vpop.xlane.xlu0 %785
    %v787 = vsel %vm518, %v771, 0.0
    %788 = vadd.xlane.f32.xlu0 %v787
    %v789 = vpop.xlane.xlu0 %788
    %v790 = vsel %vm518, %v772, 0.0
    %791 = vadd.xlane.f32.xlu0 %v790
    %v792 = vpop.xlane.xlu0 %791
    %v793 = vsel %vm518, %v773, 0.0
    %794 = vadd.xlane.f32.xlu0 %v793
    %v795 = vpop.xlane.xlu0 %794
    %v796 = vsel %vm518, %v774, 0.0
    %797 = vadd.xlane.f32.xlu0 %v796
    %v798 = vpop.xlane.xlu0 %797
    %v799 = vadd.f32 %v777, %v780
    %v800 = vadd.f32 %v799, %v783
    %v801 = vadd.f32 %v800, %v786
    %v802 = vadd.f32 %v801, %v789
    %v803 = vadd.f32 %v802, %v792
    %v804 = vadd.f32 %v803, %v795
    %v805 = vadd.f32 %v804, %v798
    %v806 = vrot.slane %v805, 4
    %v807 = vadd.f32 %v805, %v806
    %v808 = vrot.slane %v807, 2
    %v809 = vadd.f32 %v807, %v808
    %v810 = vrot.slane %v809, 1
    %v811 = vadd.f32 %v809, %v810
    %s812 = scalar_lea.vmem %s5, 64
    %v813 = vld [vmem:[%s812] sm:$0xff]
    %v814 = vld [vmem:[%s812 + $0x8] sm:$0xff]
    %v815 = vld [vmem:[%s812 + $0x10] sm:$0xff]
    %v816 = vld [vmem:[%s812 + $0x18] sm:$0xff]
    %v817 = vld [vmem:[%s812 + $0x20] sm:$0xff]
    %v818 = vld [vmem:[%s812 + $0x28] sm:$0xff]
    %v819 = vld [vmem:[%s812 + $0x30] sm:$0xff]
    %v820 = vld [vmem:[%s812 + $0x38] sm:$0xff]
    %v821 = vmul.f32 %v751, %v813
    %v822 = vmul.f32 %v752, %v814
    %v823 = vmul.f32 %v753, %v815
    %v824 = vmul.f32 %v754, %v816
    %v825 = vmul.f32 %v755, %v817
    %v826 = vmul.f32 %v756, %v818
    %v827 = vmul.f32 %v757, %v819
    %v828 = vmul.f32 %v758, %v820
    %v829 = vsel %vm518, %v821, 0.0
    %830 = vadd.xlane.f32.xlu0 %v829
    %v831 = vpop.xlane.xlu0 %830
    %v832 = vsel %vm518, %v822, 0.0
    %833 = vadd.xlane.f32.xlu0 %v832
    %v834 = vpop.xlane.xlu0 %833
    %v835 = vsel %vm518, %v823, 0.0
    %836 = vadd.xlane.f32.xlu0 %v835
    %v837 = vpop.xlane.xlu0 %836
    %v838 = vsel %vm518, %v824, 0.0
    %839 = vadd.xlane.f32.xlu0 %v838
    %v840 = vpop.xlane.xlu0 %839
    %v841 = vsel %vm518, %v825, 0.0
    %842 = vadd.xlane.f32.xlu0 %v841
    %v843 = vpop.xlane.xlu0 %842
    %v844 = vsel %vm518, %v826, 0.0
    %845 = vadd.xlane.f32.xlu0 %v844
    %v846 = vpop.xlane.xlu0 %845
    %v847 = vsel %vm518, %v827, 0.0
    %848 = vadd.xlane.f32.xlu0 %v847
    %v849 = vpop.xlane.xlu0 %848
    %v850 = vsel %vm518, %v828, 0.0
    %851 = vadd.xlane.f32.xlu0 %v850
    %v852 = vpop.xlane.xlu0 %851
    %v853 = vadd.f32 %v831, %v834
    %v854 = vadd.f32 %v853, %v837
    %v855 = vadd.f32 %v854, %v840
    %v856 = vadd.f32 %v855, %v843
    %v857 = vadd.f32 %v856, %v846
    %v858 = vadd.f32 %v857, %v849
    %v859 = vadd.f32 %v858, %v852
    %v860 = vrot.slane %v859, 4
    %v861 = vadd.f32 %v859, %v860
    %v862 = vrot.slane %v861, 2
    %v863 = vadd.f32 %v861, %v862
    %v864 = vrot.slane %v863, 1
    %v865 = vadd.f32 %v863, %v864
    %vm866 = vcmask 7168
    %v867 = vsel %vm866, %v811, %v865
    %v868 = vld [vmem:[#allocation2] sm:$0x1]
    %870 = vset.pattern.permute.xlu0 0
    %871 = vperm.xlu0 %870, %v868
    %v872 = vpop.permute.xlu0 %871
    %v874 = vlaneseq
    %v875 = vshrl.u32 %v874, 7
    %v876 = vsub.s32 0, %v875
    %v877 = vrot.slane %v872, %v876
    %v878 = vadd.f32 %v867, %v877
    %v879 = vsub.f32 0.0, %v878
    %v880 = vmul.f32 %v879, 1.442695
    %v881 = vpow.pop %v880
    %v882 = vadd.f32 %v881, 1.0
    %v883 = vrcp.pop %v882
    %v884 = vmul.f32 1.0, %v883
    %vm885 = vcmask 8192
    %886 = vst.msk [vmem:[#allocation3] sm:$0x1] %vm885, %v884
    // Predicated region
    $region30: #{_forward.5} parent=1 // pred_check
      _
    $region31: #{_forward.5} parent=1 // pred_check_branch
      %888 = sbr.rel (0) target = $region33
    $region32: #{_forward.5} parent=1 // pred_region
      %s890 = ssub.s32 16, 16
      %891 = vsyncadd [#allocation4], %s890
      %s893 = sshll.u32 [#allocation3], 4
      %s894 = int_to_ptr.vmem [resolvable:$true] %s893
      %896 = dma.vmem_to_hbm [thread:$0]  %s894, 16, %s7, [#allocation4]
    $region33: #{_forward.5} parent=1 // pred_fallthru
      _
    // Predicated region
    $region34: #{_forward.5} parent=1 // pred_check
      _
    $region35: #{_forward.5} parent=1 // pred_check_branch
      %898 = sbr.rel (0) target = $region37
    $region36: #{_forward.5} parent=1 // pred_region
      %899 = dma.done [#allocation4], 16
    $region37: #{_forward.5} parent=1 // pred_fallthru
      _
    %900 = vsyncpa [#allocation4], 1

</llo_original>
